<compile_context>
chip_gen: v6e
topology: v6e:2x2x1
jax: 0.10.0
libtpu: 0.0.40
codegen_flags: <defaults>
</compile_context>

<pallas_src>
import numpy as np
import jax
import jax.numpy as jnp
from jax.experimental import pallas as pl
from jax.experimental.pallas import tpu as pltpu


# Conv stack geometry fixed by the PyTorch module defaults.
_KERNELS = (5, 3, 3)
_STRIDES = (2, 2, 1)


def _out_size(size, k, s):
    return (size - k) // s + 1


# ----------------------------------------------------------------------------
# Fused kernel: three conv+bias+ReLU layers, everything resident in VMEM.
# ----------------------------------------------------------------------------
def _fused_encoder_kernel(x_ref,
                          s1_ref, m1_ref, c1_ref,
                          s2_ref, m2_ref, c2_ref,
                          s3_ref, m3_ref, c3_ref,
                          o_ref):
    def layer(h, s_ref, m_ref, c_ref):
        kh = s_ref.shape[0]          # static
        out = None
        for ki in range(kh):         # static unroll (5, 3, 3 taps)
            rows = jnp.dot(s_ref[ki], h, preferred_element_type=jnp.float32)
            part = jnp.dot(rows, m_ref[ki], preferred_element_type=jnp.float32)
            out = part if out is None else out + part
        return jnp.maximum(out + c_ref[...], 0.0)

    h = x_ref[...]                                  # (N*H, W*Cin)  f32
    h = layer(h, s1_ref, m1_ref, c1_ref)            # (N*14, 14*16)
    h = layer(h, s2_ref, m2_ref, c2_ref)            # (N*6,  6*32)
    o_ref[...] = layer(h, s3_ref, m3_ref, c3_ref)   # (N*4,  4*32) = (8, 128)


# ----------------------------------------------------------------------------
# One-time parameter preparation (pure numpy, done at init — not per call).
# ----------------------------------------------------------------------------
def init_params(key, in_channels=3, hidden_dims=(16, 32)):
    """Deterministic synthetic parameters (shapes match the PyTorch module)."""
    c0, c1 = hidden_dims[0], hidden_dims[1]
    cf = hidden_dims[-1]
    k = jax.random.split(key, 6)
    scale = 0.1
    return {
        "w1": scale * jax.random.normal(k[0], (c0, in_channels, 5, 5), jnp.float32),
        "b1": scale * jax.random.normal(k[1], (c0,), jnp.float32),
        "w2": scale * jax.random.normal(k[2], (c1, c0, 3, 3), jnp.float32),
        "b2": scale * jax.random.normal(k[3], (c1,), jnp.float32),
        "w3": scale * jax.random.normal(k[4], (cf, c1, 3, 3), jnp.float32),
        "b3": scale * jax.random.normal(k[5], (cf,), jnp.float32),
    }


def _layer_operators(w_oihw, b, N, H, W, stride, scale=1.0):
    """Build (S, M, bias_row) structured operators for one valid conv layer.

    With Xm[(n*H+h), (w*Cin+ci)] = X[n,h,w,ci]:
        Om = relu( sum_ki (S_ki @ Xm) @ M_ki + bias_row )
    reproduces conv(scale * X) + b exactly.
    """
    w = np.asarray(w_oihw, np.float32)
    b = np.asarray(b, np.float32)
    cout, cin, kh, kw = w.shape
    OH = _out_size(H, kh, stride)
    OW = _out_size(W, kw, stride)

    # Row-selection operator (absorbs the vertical stride and tap ki).
    S = np.zeros((kh, N * OH, N * H), np.float32)
    for ki in range(kh):
        for n in range(N):
            for oh in range(OH):
                S[ki, n * OH + oh, n * H + stride * oh + ki] = 1.0

    # Horizontal conv + channel-contraction operator (absorbs W-stride & taps kj).
    M = np.zeros((kh, W * cin, OW * cout), np.float32)
    for ki in range(kh):
        for ow in range(OW):
            for kj in range(kw):
                wcol = stride * ow + kj
                M[ki, wcol * cin:(wcol + 1) * cin,
                  ow * cout:(ow + 1) * cout] = scale * w[:, :, ki, kj].T

    bias_row = np.tile(b, OW).reshape(1, OW * cout)
    return S, M, bias_row, OH, OW, cout


def build_fused_params(params, N, H, W, in_channels=3):
    """Precompute all structured operators once (folds the /10 into layer 1)."""
    fused = {}
    h, w = H, W
    specs = (("1", params["w1"], params["b1"], _STRIDES[0], 0.1),
             ("2", params["w2"], params["b2"], _STRIDES[1], 1.0),
             ("3", params["w3"], params["b3"], _STRIDES[2], 1.0))
    for name, wt, bs, stride, scale in specs:
        S, M, brow, oh, ow, cout = _layer_operators(wt, bs, N, h, w, stride, scale)
        fused["s" + name] = jnp.asarray(S)
        fused["m" + name] = jnp.asarray(M)
        fused["c" + name] = jnp.asarray(brow)
        h, w = oh, ow
    meta = {"out_nhwc": (N, h, w, cout)}
    return fused, meta


# ----------------------------------------------------------------------------
# Forward pass.
# ----------------------------------------------------------------------------
@jax.jit
def random_encoder_minigrid_forward(x_nchw, fused):
    """Forward pass. Input NCHW float32; output NCHW float32 feature map."""
    N, C, H, W = x_nchw.shape
    OH1, OW1 = _out_size(H, 5, 2), _out_size(W, 5, 2)
    OH2, OW2 = _out_size(OH1, 3, 2), _out_size(OW1, 3, 2)
    OH3, OW3 = _out_size(OH2, 3, 1), _out_size(OW2, 3, 1)
    cf = fused["c3"].shape[1] // OW3

    # NCHW -> NHWC -> (N*H, W*C) row-image layout (tiny, layout plumbing only).
    xm = jnp.transpose(x_nchw, (0, 2, 3, 1)).reshape(N * H, W * C)

    args = (xm,
            fused["s1"], fused["m1"], fused["c1"],
            fused["s2"], fused["m2"], fused["c2"],
            fused["s3"], fused["m3"], fused["c3"])

    # Advisory cost estimate for the XLA scheduler.
    flops = 0
    bytes_accessed = xm.size * 4 + (N * OH3) * (OW3 * cf) * 4
    for name in ("1", "2", "3"):
        s, m, c = fused["s" + name], fused["m" + name], fused["c" + name]
        kh, noh, nh = s.shape
        _, wcin, owcout = m.shape
        flops += 2 * kh * noh * wcin * (nh + owcout)
        bytes_accessed += (s.size + m.size + c.size) * 4

    out2d = pl.pallas_call(
        _fused_encoder_kernel,
        out_shape=jax.ShapeDtypeStruct((N * OH3, OW3 * cf), jnp.float32),
        in_specs=[pl.BlockSpec(memory_space=pltpu.MemorySpace.VMEM)] * len(args),
        out_specs=pl.BlockSpec(memory_space=pltpu.MemorySpace.VMEM),
        cost_estimate=pl.CostEstimate(flops=flops, transcendentals=0,
                                      bytes_accessed=bytes_accessed),
    )(*args)

    out = out2d.reshape(N, OH3, OW3, cf)
    return jnp.transpose(out, (0, 3, 1, 2))          # NHWC -> NCHW
    # TODO(synk): optional Flatten+Linear head (linear_out_dim) and residual
    # layers are disabled by the module defaults and therefore not emitted.


# ----------------------------------------------------------------------------
# Pure-JAX reference (lax conv) for correctness checking.
# ----------------------------------------------------------------------------
def _reference_forward(x_nchw, params):
    x = x_nchw / 10.0
    dn = ("NCHW", "OIHW", "NCHW")
    for wname, bname, s in (("w1", "b1", 2), ("w2", "b2", 2), ("w3", "b3", 1)):
        x = jax.lax.conv_general_dilated(
            x, params[wname], window_strides=(s, s), padding="VALID",
            dimension_numbers=dn)
        x = jnp.maximum(x + params[bname][None, :, None, None], 0.0)
    return x


if __name__ == "__main__":
    key = jax.random.PRNGKey(0)
    kx, kp = jax.random.split(key)

    # Small MiniGrid-like RGB observation batch: N=2, C=3, H=W=32.
    # 32 -> conv(5,s2) -> 14 -> conv(3,s2) -> 6 -> conv(3,s1) -> 4
    x = 10.0 * jax.random.uniform(kx, (2, 3, 32, 32), jnp.float32)
    params = init_params(kp)
    fused, meta = build_fused_params(params, N=2, H=32, W=32, in_channels=3)

    out = random_encoder_minigrid_forward(x, fused)
    out = jax.block_until_ready(out)

    ref = _reference_forward(x, params)
    assert out.shape == (2, 32, 4, 4), out.shape
    assert jnp.allclose(out, ref, atol=1e-4, rtol=1e-4), \
        float(jnp.max(jnp.abs(out - ref)))

    print("KERNEL_OK")
</pallas_src>

<mosaic_0001>
module attributes {stable_mosaic.version = 11 : i64} {
  func.func @_fused_encoder_kernel(%arg0: memref<64x96xf32, #tpu.memory_space<vmem>>, %arg1: memref<5x28x64xf32, #tpu.memory_space<vmem>>, %arg2: memref<5x96x224xf32, #tpu.memory_space<vmem>>, %arg3: memref<1x224xf32, #tpu.memory_space<vmem>>, %arg4: memref<3x12x28xf32, #tpu.memory_space<vmem>>, %arg5: memref<3x224x192xf32, #tpu.memory_space<vmem>>, %arg6: memref<1x192xf32, #tpu.memory_space<vmem>>, %arg7: memref<3x8x12xf32, #tpu.memory_space<vmem>>, %arg8: memref<3x192x128xf32, #tpu.memory_space<vmem>>, %arg9: memref<1x128xf32, #tpu.memory_space<vmem>>, %arg10: memref<8x128xf32, #tpu.memory_space<vmem>>) attributes {dimension_semantics = [], scalar_prefetch = 0 : i64, scratch_operands = 0 : i64, tpu.core_type = #tpu.core_type<tc>} {
    %c0 = arith.constant 0 : index
    %c0_0 = arith.constant 0 : index
    %0 = vector.load %arg0[%c0, %c0_0] : memref<64x96xf32, #tpu.memory_space<vmem>>, vector<64x96xf32>
    %c0_1 = arith.constant 0 : index
    %c0_2 = arith.constant 0 : index
    %c0_3 = arith.constant 0 : index
    %1 = vector.load %arg1[%c0_1, %c0_2, %c0_3] : memref<5x28x64xf32, #tpu.memory_space<vmem>>, vector<1x28x64xf32>
    %2 = vector.shape_cast %1 : vector<1x28x64xf32> to vector<28x64xf32>
    %cst = arith.constant dense<0.000000e+00> : vector<28x96xf32>
    %3 = tpu.matmul %2, %0, %cst {dimension_numbers = #tpu.dot_dimension_numbers<[1], [0], [0], [1], [0, 0, 1, 1], [], []>} : vector<28x64xf32>, vector<64x96xf32>, vector<28x96xf32> -> vector<28x96xf32>
    %c0_4 = arith.constant 0 : index
    %c0_5 = arith.constant 0 : index
    %c0_6 = arith.constant 0 : index
    %4 = vector.load %arg2[%c0_4, %c0_5, %c0_6] : memref<5x96x224xf32, #tpu.memory_space<vmem>>, vector<1x96x224xf32>
    %5 = vector.shape_cast %4 : vector<1x96x224xf32> to vector<96x224xf32>
    %cst_7 = arith.constant dense<0.000000e+00> : vector<28x224xf32>
    %6 = tpu.matmul %3, %5, %cst_7 {dimension_numbers = #tpu.dot_dimension_numbers<[1], [0], [0], [1], [0, 0, 1, 1], [], []>} : vector<28x96xf32>, vector<96x224xf32>, vector<28x224xf32> -> vector<28x224xf32>
    %c1 = arith.constant 1 : index
    %c0_8 = arith.constant 0 : index
    %c0_9 = arith.constant 0 : index
    %7 = vector.load %arg1[%c1, %c0_8, %c0_9] : memref<5x28x64xf32, #tpu.memory_space<vmem>>, vector<1x28x64xf32>
    %8 = vector.shape_cast %7 : vector<1x28x64xf32> to vector<28x64xf32>
    %cst_10 = arith.constant dense<0.000000e+00> : vector<28x96xf32>
    %9 = tpu.matmul %8, %0, %cst_10 {dimension_numbers = #tpu.dot_dimension_numbers<[1], [0], [0], [1], [0, 0, 1, 1], [], []>} : vector<28x64xf32>, vector<64x96xf32>, vector<28x96xf32> -> vector<28x96xf32>
    %c1_11 = arith.constant 1 : index
    %c0_12 = arith.constant 0 : index
    %c0_13 = arith.constant 0 : index
    %10 = vector.load %arg2[%c1_11, %c0_12, %c0_13] : memref<5x96x224xf32, #tpu.memory_space<vmem>>, vector<1x96x224xf32>
    %11 = vector.shape_cast %10 : vector<1x96x224xf32> to vector<96x224xf32>
    %cst_14 = arith.constant dense<0.000000e+00> : vector<28x224xf32>
    %12 = tpu.matmul %9, %11, %cst_14 {dimension_numbers = #tpu.dot_dimension_numbers<[1], [0], [0], [1], [0, 0, 1, 1], [], []>} : vector<28x96xf32>, vector<96x224xf32>, vector<28x224xf32> -> vector<28x224xf32>
    %13 = arith.addf %6, %12 : vector<28x224xf32>
    %c2 = arith.constant 2 : index
    %c0_15 = arith.constant 0 : index
    %c0_16 = arith.constant 0 : index
    %14 = vector.load %arg1[%c2, %c0_15, %c0_16] : memref<5x28x64xf32, #tpu.memory_space<vmem>>, vector<1x28x64xf32>
    %15 = vector.shape_cast %14 : vector<1x28x64xf32> to vector<28x64xf32>
    %cst_17 = arith.constant dense<0.000000e+00> : vector<28x96xf32>
    %16 = tpu.matmul %15, %0, %cst_17 {dimension_numbers = #tpu.dot_dimension_numbers<[1], [0], [0], [1], [0, 0, 1, 1], [], []>} : vector<28x64xf32>, vector<64x96xf32>, vector<28x96xf32> -> vector<28x96xf32>
    %c2_18 = arith.constant 2 : index
    %c0_19 = arith.constant 0 : index
    %c0_20 = arith.constant 0 : index
    %17 = vector.load %arg2[%c2_18, %c0_19, %c0_20] : memref<5x96x224xf32, #tpu.memory_space<vmem>>, vector<1x96x224xf32>
    %18 = vector.shape_cast %17 : vector<1x96x224xf32> to vector<96x224xf32>
    %cst_21 = arith.constant dense<0.000000e+00> : vector<28x224xf32>
    %19 = tpu.matmul %16, %18, %cst_21 {dimension_numbers = #tpu.dot_dimension_numbers<[1], [0], [0], [1], [0, 0, 1, 1], [], []>} : vector<28x96xf32>, vector<96x224xf32>, vector<28x224xf32> -> vector<28x224xf32>
    %20 = arith.addf %13, %19 : vector<28x224xf32>
    %c3 = arith.constant 3 : index
    %c0_22 = arith.constant 0 : index
    %c0_23 = arith.constant 0 : index
    %21 = vector.load %arg1[%c3, %c0_22, %c0_23] : memref<5x28x64xf32, #tpu.memory_space<vmem>>, vector<1x28x64xf32>
    %22 = vector.shape_cast %21 : vector<1x28x64xf32> to vector<28x64xf32>
    %cst_24 = arith.constant dense<0.000000e+00> : vector<28x96xf32>
    %23 = tpu.matmul %22, %0, %cst_24 {dimension_numbers = #tpu.dot_dimension_numbers<[1], [0], [0], [1], [0, 0, 1, 1], [], []>} : vector<28x64xf32>, vector<64x96xf32>, vector<28x96xf32> -> vector<28x96xf32>
    %c3_25 = arith.constant 3 : index
    %c0_26 = arith.constant 0 : index
    %c0_27 = arith.constant 0 : index
    %24 = vector.load %arg2[%c3_25, %c0_26, %c0_27] : memref<5x96x224xf32, #tpu.memory_space<vmem>>, vector<1x96x224xf32>
    %25 = vector.shape_cast %24 : vector<1x96x224xf32> to vector<96x224xf32>
    %cst_28 = arith.constant dense<0.000000e+00> : vector<28x224xf32>
    %26 = tpu.matmul %23, %25, %cst_28 {dimension_numbers = #tpu.dot_dimension_numbers<[1], [0], [0], [1], [0, 0, 1, 1], [], []>} : vector<28x96xf32>, vector<96x224xf32>, vector<28x224xf32> -> vector<28x224xf32>
    %27 = arith.addf %20, %26 : vector<28x224xf32>
    %c4 = arith.constant 4 : index
    %c0_29 = arith.constant 0 : index
    %c0_30 = arith.constant 0 : index
    %28 = vector.load %arg1[%c4, %c0_29, %c0_30] : memref<5x28x64xf32, #tpu.memory_space<vmem>>, vector<1x28x64xf32>
    %29 = vector.shape_cast %28 : vector<1x28x64xf32> to vector<28x64xf32>
    %cst_31 = arith.constant dense<0.000000e+00> : vector<28x96xf32>
    %30 = tpu.matmul %29, %0, %cst_31 {dimension_numbers = #tpu.dot_dimension_numbers<[1], [0], [0], [1], [0, 0, 1, 1], [], []>} : vector<28x64xf32>, vector<64x96xf32>, vector<28x96xf32> -> vector<28x96xf32>
    %c4_32 = arith.constant 4 : index
    %c0_33 = arith.constant 0 : index
    %c0_34 = arith.constant 0 : index
    %31 = vector.load %arg2[%c4_32, %c0_33, %c0_34] : memref<5x96x224xf32, #tpu.memory_space<vmem>>, vector<1x96x224xf32>
    %32 = vector.shape_cast %31 : vector<1x96x224xf32> to vector<96x224xf32>
    %cst_35 = arith.constant dense<0.000000e+00> : vector<28x224xf32>
    %33 = tpu.matmul %30, %32, %cst_35 {dimension_numbers = #tpu.dot_dimension_numbers<[1], [0], [0], [1], [0, 0, 1, 1], [], []>} : vector<28x96xf32>, vector<96x224xf32>, vector<28x224xf32> -> vector<28x224xf32>
    %34 = arith.addf %27, %33 : vector<28x224xf32>
    %c0_36 = arith.constant 0 : index
    %c0_37 = arith.constant 0 : index
    %35 = vector.load %arg3[%c0_36, %c0_37] : memref<1x224xf32, #tpu.memory_space<vmem>>, vector<1x224xf32>
    %36 = vector.broadcast %35 : vector<1x224xf32> to vector<28x224xf32>
    %37 = arith.addf %34, %36 : vector<28x224xf32>
    %cst_38 = arith.constant 0.000000e+00 : f32
    %38 = vector.broadcast %cst_38 : f32 to vector<28x224xf32>
    %39 = arith.maximumf %37, %38 : vector<28x224xf32>
    %c0_39 = arith.constant 0 : index
    %c0_40 = arith.constant 0 : index
    %c0_41 = arith.constant 0 : index
    %40 = vector.load %arg4[%c0_39, %c0_40, %c0_41] : memref<3x12x28xf32, #tpu.memory_space<vmem>>, vector<1x12x28xf32>
    %41 = vector.shape_cast %40 : vector<1x12x28xf32> to vector<12x28xf32>
    %cst_42 = arith.constant dense<0.000000e+00> : vector<12x224xf32>
    %42 = tpu.matmul %41, %39, %cst_42 {dimension_numbers = #tpu.dot_dimension_numbers<[1], [0], [0], [1], [0, 0, 1, 1], [], []>} : vector<12x28xf32>, vector<28x224xf32>, vector<12x224xf32> -> vector<12x224xf32>
    %c0_43 = arith.constant 0 : index
    %c0_44 = arith.constant 0 : index
    %c0_45 = arith.constant 0 : index
    %43 = vector.load %arg5[%c0_43, %c0_44, %c0_45] : memref<3x224x192xf32, #tpu.memory_space<vmem>>, vector<1x224x192xf32>
    %44 = vector.shape_cast %43 : vector<1x224x192xf32> to vector<224x192xf32>
    %cst_46 = arith.constant dense<0.000000e+00> : vector<12x192xf32>
    %45 = tpu.matmul %42, %44, %cst_46 {dimension_numbers = #tpu.dot_dimension_numbers<[1], [0], [0], [1], [0, 0, 1, 1], [], []>} : vector<12x224xf32>, vector<224x192xf32>, vector<12x192xf32> -> vector<12x192xf32>
    %c1_47 = arith.constant 1 : index
    %c0_48 = arith.constant 0 : index
    %c0_49 = arith.constant 0 : index
    %46 = vector.load %arg4[%c1_47, %c0_48, %c0_49] : memref<3x12x28xf32, #tpu.memory_space<vmem>>, vector<1x12x28xf32>
    %47 = vector.shape_cast %46 : vector<1x12x28xf32> to vector<12x28xf32>
    %cst_50 = arith.constant dense<0.000000e+00> : vector<12x224xf32>
    %48 = tpu.matmul %47, %39, %cst_50 {dimension_numbers = #tpu.dot_dimension_numbers<[1], [0], [0], [1], [0, 0, 1, 1], [], []>} : vector<12x28xf32>, vector<28x224xf32>, vector<12x224xf32> -> vector<12x224xf32>
    %c1_51 = arith.constant 1 : index
    %c0_52 = arith.constant 0 : index
    %c0_53 = arith.constant 0 : index
    %49 = vector.load %arg5[%c1_51, %c0_52, %c0_53] : memref<3x224x192xf32, #tpu.memory_space<vmem>>, vector<1x224x192xf32>
    %50 = vector.shape_cast %49 : vector<1x224x192xf32> to vector<224x192xf32>
    %cst_54 = arith.constant dense<0.000000e+00> : vector<12x192xf32>
    %51 = tpu.matmul %48, %50, %cst_54 {dimension_numbers = #tpu.dot_dimension_numbers<[1], [0], [0], [1], [0, 0, 1, 1], [], []>} : vector<12x224xf32>, vector<224x192xf32>, vector<12x192xf32> -> vector<12x192xf32>
    %52 = arith.addf %45, %51 : vector<12x192xf32>
    %c2_55 = arith.constant 2 : index
    %c0_56 = arith.constant 0 : index
    %c0_57 = arith.constant 0 : index
    %53 = vector.load %arg4[%c2_55, %c0_56, %c0_57] : memref<3x12x28xf32, #tpu.memory_space<vmem>>, vector<1x12x28xf32>
    %54 = vector.shape_cast %53 : vector<1x12x28xf32> to vector<12x28xf32>
    %cst_58 = arith.constant dense<0.000000e+00> : vector<12x224xf32>
    %55 = tpu.matmul %54, %39, %cst_58 {dimension_numbers = #tpu.dot_dimension_numbers<[1], [0], [0], [1], [0, 0, 1, 1], [], []>} : vector<12x28xf32>, vector<28x224xf32>, vector<12x224xf32> -> vector<12x224xf32>
    %c2_59 = arith.constant 2 : index
    %c0_60 = arith.constant 0 : index
    %c0_61 = arith.constant 0 : index
    %56 = vector.load %arg5[%c2_59, %c0_60, %c0_61] : memref<3x224x192xf32, #tpu.memory_space<vmem>>, vector<1x224x192xf32>
    %57 = vector.shape_cast %56 : vector<1x224x192xf32> to vector<224x192xf32>
    %cst_62 = arith.constant dense<0.000000e+00> : vector<12x192xf32>
    %58 = tpu.matmul %55, %57, %cst_62 {dimension_numbers = #tpu.dot_dimension_numbers<[1], [0], [0], [1], [0, 0, 1, 1], [], []>} : vector<12x224xf32>, vector<224x192xf32>, vector<12x192xf32> -> vector<12x192xf32>
    %59 = arith.addf %52, %58 : vector<12x192xf32>
    %c0_63 = arith.constant 0 : index
    %c0_64 = arith.constant 0 : index
    %60 = vector.load %arg6[%c0_63, %c0_64] : memref<1x192xf32, #tpu.memory_space<vmem>>, vector<1x192xf32>
    %61 = vector.broadcast %60 : vector<1x192xf32> to vector<12x192xf32>
    %62 = arith.addf %59, %61 : vector<12x192xf32>
    %cst_65 = arith.constant 0.000000e+00 : f32
    %63 = vector.broadcast %cst_65 : f32 to vector<12x192xf32>
    %64 = arith.maximumf %62, %63 : vector<12x192xf32>
    %c0_66 = arith.constant 0 : index
    %c0_67 = arith.constant 0 : index
    %c0_68 = arith.constant 0 : index
    %65 = vector.load %arg7[%c0_66, %c0_67, %c0_68] : memref<3x8x12xf32, #tpu.memory_space<vmem>>, vector<1x8x12xf32>
    %66 = vector.shape_cast %65 : vector<1x8x12xf32> to vector<8x12xf32>
    %cst_69 = arith.constant dense<0.000000e+00> : vector<8x192xf32>
    %67 = tpu.matmul %66, %64, %cst_69 {dimension_numbers = #tpu.dot_dimension_numbers<[1], [0], [0], [1], [0, 0, 1, 1], [], []>} : vector<8x12xf32>, vector<12x192xf32>, vector<8x192xf32> -> vector<8x192xf32>
    %c0_70 = arith.constant 0 : index
    %c0_71 = arith.constant 0 : index
    %c0_72 = arith.constant 0 : index
    %68 = vector.load %arg8[%c0_70, %c0_71, %c0_72] : memref<3x192x128xf32, #tpu.memory_space<vmem>>, vector<1x192x128xf32>
    %69 = vector.shape_cast %68 : vector<1x192x128xf32> to vector<192x128xf32>
    %cst_73 = arith.constant dense<0.000000e+00> : vector<8x128xf32>
    %70 = tpu.matmul %67, %69, %cst_73 {dimension_numbers = #tpu.dot_dimension_numbers<[1], [0], [0], [1], [0, 0, 1, 1], [], []>} : vector<8x192xf32>, vector<192x128xf32>, vector<8x128xf32> -> vector<8x128xf32>
    %c1_74 = arith.constant 1 : index
    %c0_75 = arith.constant 0 : index
    %c0_76 = arith.constant 0 : index
    %71 = vector.load %arg7[%c1_74, %c0_75, %c0_76] : memref<3x8x12xf32, #tpu.memory_space<vmem>>, vector<1x8x12xf32>
    %72 = vector.shape_cast %71 : vector<1x8x12xf32> to vector<8x12xf32>
    %cst_77 = arith.constant dense<0.000000e+00> : vector<8x192xf32>
    %73 = tpu.matmul %72, %64, %cst_77 {dimension_numbers = #tpu.dot_dimension_numbers<[1], [0], [0], [1], [0, 0, 1, 1], [], []>} : vector<8x12xf32>, vector<12x192xf32>, vector<8x192xf32> -> vector<8x192xf32>
    %c1_78 = arith.constant 1 : index
    %c0_79 = arith.constant 0 : index
    %c0_80 = arith.constant 0 : index
    %74 = vector.load %arg8[%c1_78, %c0_79, %c0_80] : memref<3x192x128xf32, #tpu.memory_space<vmem>>, vector<1x192x128xf32>
    %75 = vector.shape_cast %74 : vector<1x192x128xf32> to vector<192x128xf32>
    %cst_81 = arith.constant dense<0.000000e+00> : vector<8x128xf32>
    %76 = tpu.matmul %73, %75, %cst_81 {dimension_numbers = #tpu.dot_dimension_numbers<[1], [0], [0], [1], [0, 0, 1, 1], [], []>} : vector<8x192xf32>, vector<192x128xf32>, vector<8x128xf32> -> vector<8x128xf32>
    %77 = arith.addf %70, %76 : vector<8x128xf32>
    %c2_82 = arith.constant 2 : index
    %c0_83 = arith.constant 0 : index
    %c0_84 = arith.constant 0 : index
    %78 = vector.load %arg7[%c2_82, %c0_83, %c0_84] : memref<3x8x12xf32, #tpu.memory_space<vmem>>, vector<1x8x12xf32>
    %79 = vector.shape_cast %78 : vector<1x8x12xf32> to vector<8x12xf32>
    %cst_85 = arith.constant dense<0.000000e+00> : vector<8x192xf32>
    %80 = tpu.matmul %79, %64, %cst_85 {dimension_numbers = #tpu.dot_dimension_numbers<[1], [0], [0], [1], [0, 0, 1, 1], [], []>} : vector<8x12xf32>, vector<12x192xf32>, vector<8x192xf32> -> vector<8x192xf32>
    %c2_86 = arith.constant 2 : index
    %c0_87 = arith.constant 0 : index
    %c0_88 = arith.constant 0 : index
    %81 = vector.load %arg8[%c2_86, %c0_87, %c0_88] : memref<3x192x128xf32, #tpu.memory_space<vmem>>, vector<1x192x128xf32>
    %82 = vector.shape_cast %81 : vector<1x192x128xf32> to vector<192x128xf32>
    %cst_89 = arith.constant dense<0.000000e+00> : vector<8x128xf32>
    %83 = tpu.matmul %80, %82, %cst_89 {dimension_numbers = #tpu.dot_dimension_numbers<[1], [0], [0], [1], [0, 0, 1, 1], [], []>} : vector<8x192xf32>, vector<192x128xf32>, vector<8x128xf32> -> vector<8x128xf32>
    %84 = arith.addf %77, %83 : vector<8x128xf32>
    %c0_90 = arith.constant 0 : index
    %c0_91 = arith.constant 0 : index
    %85 = vector.load %arg9[%c0_90, %c0_91] : memref<1x128xf32, #tpu.memory_space<vmem>>, vector<1x128xf32>
    %86 = vector.broadcast %85 : vector<1x128xf32> to vector<8x128xf32>
    %87 = arith.addf %84, %86 : vector<8x128xf32>
    %cst_92 = arith.constant 0.000000e+00 : f32
    %88 = vector.broadcast %cst_92 : f32 to vector<8x128xf32>
    %89 = arith.maximumf %87, %88 : vector<8x128xf32>
    %c0_93 = arith.constant 0 : index
    %c0_94 = arith.constant 0 : index
    %90 = vector.load %arg10[%c0_93, %c0_94] : memref<8x128xf32, #tpu.memory_space<vmem>>, vector<8x128xf32>
    tpu.vector_store %arg10[%c0_93, %c0_94], %89 {strides = array<i32>} : memref<8x128xf32, #tpu.memory_space<vmem>>, vector<8x128xf32>,
    return
  }
}

</mosaic_0001>

<llo_original>
// kernel: random_encoder_minigrid_forward.1
$region0: #{random_encoder_minigrid_forward.1}
  #allocation0 [shape = 'u32[]', space=smem, size = 0x4, offset = 0x4, fixed_abs, tag = 'smem constant byte address 0x4 - core index']
  #allocation1 [shape = 'u32[144,128]{1,0:T(1,128)}', space=vmem, size = 0x12000, scoped, tag = 'internal scratch']
  %s0 = inlined_call_operand.vmem [shape: f32[64,96], index: 0, kind: input, shape index: {}]
  %s1 = inlined_call_operand.vmem [shape: f32[5,28,64], index: 1, kind: input, shape index: {}]
  %s2 = inlined_call_operand.vmem [shape: f32[5,96,224], index: 2, kind: input, shape index: {}]
  %s3 = inlined_call_operand.vmem [shape: f32[1,224], index: 3, kind: input, shape index: {}]
  %s4 = inlined_call_operand.vmem [shape: f32[3,12,28], index: 4, kind: input, shape index: {}]
  %s5 = inlined_call_operand.vmem [shape: f32[3,224,192], index: 5, kind: input, shape index: {}]
  %s6 = inlined_call_operand.vmem [shape: f32[1,192], index: 6, kind: input, shape index: {}]
  %s7 = inlined_call_operand.vmem [shape: f32[3,8,12], index: 7, kind: input, shape index: {}]
  %s8 = inlined_call_operand.vmem [shape: f32[3,192,128], index: 8, kind: input, shape index: {}]
  %s9 = inlined_call_operand.vmem [shape: f32[1,128], index: 9, kind: input, shape index: {}]
  %s10 = inlined_call_operand.vmem [shape: f32[8,128], index: 10, kind: output, shape index: {}]
  %s11 = sld [smem:[#allocation0]]
  $region50: #{random_encoder_minigrid_forward.1} parent=0
    _
  %s13 = ssub.s32 1, %s11
  %s14 = scalar_select 0, %s13, %s11
  // Predicated region
  $region2: #{random_encoder_minigrid_forward.1} parent=0 // pred_check
    _
  $region3: #{random_encoder_minigrid_forward.1} parent=0 // pred_check_branch
    %16 = sbr.rel (0) target = $region5
  $region4: #{random_encoder_minigrid_forward.1} parent=0 // pred_region
    _
  $region5: #{random_encoder_minigrid_forward.1} parent=0 // pred_fallthru
    _
  // Predicated region
  $region6: #{random_encoder_minigrid_forward.1} parent=0 // pred_check
    _
  $region7: #{random_encoder_minigrid_forward.1} parent=0 // pred_check_branch
    %18 = sbr.rel (0) target = $region9
  $region8: #{random_encoder_minigrid_forward.1} parent=0 // pred_region
    _
  $region9: #{random_encoder_minigrid_forward.1} parent=0 // pred_fallthru
    _
  // Predicated region
  $region10: #{random_encoder_minigrid_forward.1} parent=0 // pred_check
    _
  $region11: #{random_encoder_minigrid_forward.1} parent=0 // pred_check_branch
    %20 = sbr.rel (0) target = $region13
  $region12: #{random_encoder_minigrid_forward.1} parent=0 // pred_region
    _
  $region13: #{random_encoder_minigrid_forward.1} parent=0 // pred_fallthru
    _
  // Predicated region
  $region14: #{random_encoder_minigrid_forward.1} parent=0 // pred_check
    _
  $region15: #{random_encoder_minigrid_forward.1} parent=0 // pred_check_branch
    %22 = sbr.rel (0) target = $region17
  $region16: #{random_encoder_minigrid_forward.1} parent=0 // pred_region
    _
  $region17: #{random_encoder_minigrid_forward.1} parent=0 // pred_fallthru
    _
  // Predicated region
  $region18: #{random_encoder_minigrid_forward.1} parent=0 // pred_check
    _
  $region19: #{random_encoder_minigrid_forward.1} parent=0 // pred_check_branch
    %24 = sbr.rel (0) target = $region21
  $region20: #{random_encoder_minigrid_forward.1} parent=0 // pred_region
    _
  $region21: #{random_encoder_minigrid_forward.1} parent=0 // pred_fallthru
    _
  // Predicated region
  $region22: #{random_encoder_minigrid_forward.1} parent=0 // pred_check
    _
  $region23: #{random_encoder_minigrid_forward.1} parent=0 // pred_check_branch
    %26 = sbr.rel (0) target = $region25
  $region24: #{random_encoder_minigrid_forward.1} parent=0 // pred_region
    _
  $region25: #{random_encoder_minigrid_forward.1} parent=0 // pred_fallthru
    _
  // Predicated region
  $region26: #{random_encoder_minigrid_forward.1} parent=0 // pred_check
    _
  $region27: #{random_encoder_minigrid_forward.1} parent=0 // pred_check_branch
    %28 = sbr.rel (0) target = $region29
  $region28: #{random_encoder_minigrid_forward.1} parent=0 // pred_region
    _
  $region29: #{random_encoder_minigrid_forward.1} parent=0 // pred_fallthru
    _
  // Predicated region
  $region30: #{random_encoder_minigrid_forward.1} parent=0 // pred_check
    _
  $region31: #{random_encoder_minigrid_forward.1} parent=0 // pred_check_branch
    %30 = sbr.rel (0) target = $region33
  $region32: #{random_encoder_minigrid_forward.1} parent=0 // pred_region
    _
  $region33: #{random_encoder_minigrid_forward.1} parent=0 // pred_fallthru
    _
  // Predicated region
  $region34: #{random_encoder_minigrid_forward.1} parent=0 // pred_check
    _
  $region35: #{random_encoder_minigrid_forward.1} parent=0 // pred_check_branch
    %32 = sbr.rel (0) target = $region37
  $region36: #{random_encoder_minigrid_forward.1} parent=0 // pred_region
    _
  $region37: #{random_encoder_minigrid_forward.1} parent=0 // pred_fallthru
    _
  // Predicated region
  $region38: #{random_encoder_minigrid_forward.1} parent=0 // pred_check
    _
  $region39: #{random_encoder_minigrid_forward.1} parent=0 // pred_check_branch
    %34 = sbr.rel (0) target = $region41
  $region40: #{random_encoder_minigrid_forward.1} parent=0 // pred_region
    _
  $region41: #{random_encoder_minigrid_forward.1} parent=0 // pred_fallthru
    _
  %v35 = vld [vmem:[%s0] sm:$0xff]
  %v36 = vld [vmem:[%s0 + $0x8] sm:$0xff]
  %v37 = vld [vmem:[%s0 + $0x10] sm:$0xff]
  %v38 = vld [vmem:[%s0 + $0x18] sm:$0xff]
  %v39 = vld [vmem:[%s0 + $0x20] sm:$0xff]
  %v40 = vld [vmem:[%s0 + $0x28] sm:$0xff]
  %v41 = vld [vmem:[%s0 + $0x30] sm:$0xff]
  %v42 = vld [vmem:[%s0 + $0x38] sm:$0xff]
  %v43 = vld [vmem:[%s1] sm:$0xff]
  %v44 = vld [vmem:[%s1 + $0x8] sm:$0xff]
  %v45 = vld [vmem:[%s1 + $0x10] sm:$0xff]
  %v46 = vld [vmem:[%s1 + $0x18] sm:$0xf]
  %vm47 = vcmask 523264
  %v49 = vsel %vm47, %v43, 0
  %v52 = vsel %vm47, %v44, 0
  %v55 = vsel %vm47, %v45, 0
  %v58 = vsel %vm47, %v46, 0
  %60 = vmatprep.subr.mxu0 0.0
  %61 = vmatpush1.msra.mxu0 0.0
  %62 = vmatprep.subr.mxu0 0.0
  %63 = vmatpush1.msra.mxu0 0.0
  %64 = vmatprep.subr.mxu0 0.0
  %65 = vmatpush1.msra.mxu0 0.0
  %66 = vmatprep.subr.mxu0 0.0
  %67 = vmatpush1.msra.mxu0 0.0
  %68 = vmatprep.subr.mxu0 0.0
  %69 = vmatpush1.msra.mxu0 0.0
  %70 = vmatprep.subr.mxu0 0.0
  %71 = vmatpush1.msra.mxu0 0.0
  %72 = vmatprep.subr.mxu0 0.0
  %73 = vmatpush1.msra.mxu0 0.0
  %74 = vmatprep.subr.mxu0 0.0
  %75 = vmatpush1.msra.mxu0 0.0
  %76 = vmatprep.subr.mxu0 0.0
  %77 = vmatpush1.msra.mxu0 %v42
  %78 = vmatprep.subr.mxu0 0.0
  %79 = vmatpush1.msra.mxu0 %v41
  %80 = vmatprep.subr.mxu0 0.0
  %81 = vmatpush1.msra.mxu0 %v40
  %82 = vmatprep.subr.mxu0 0.0
  %83 = vmatpush1.msra.mxu0 %v39
  %84 = vmatprep.subr.mxu0 0.0
  %85 = vmatpush1.msra.mxu0 %v38
  %86 = vmatprep.subr.mxu0 0.0
  %87 = vmatpush1.msra.mxu0 %v37
  %88 = vmatprep.subr.mxu0 0.0
  %89 = vmatpush1.msra.mxu0 %v36
  %90 = vmatprep.subr.mxu0 0.0
  %91 = vmatpush1.msra.mxu0 %v35
  %92 = vmatprep.subr.mxu0 0.0
  %93 = vmatpush2.msra.mxu0 0.0
  %94 = vmatprep.subr.mxu0 0.0
  %95 = vmatpush2.msra.mxu0 0.0
  %96 = vmatprep.subr.mxu0 0.0
  %97 = vmatpush2.msra.mxu0 0.0
  %98 = vmatprep.subr.mxu0 0.0
  %99 = vmatpush2.msra.mxu0 0.0
  %100 = vmatprep.subr.mxu0 0.0
  %101 = vmatpush2.msra.mxu0 0.0
  %102 = vmatprep.subr.mxu0 0.0
  %103 = vmatpush2.msra.mxu0 0.0
  %104 = vmatprep.subr.mxu0 0.0
  %105 = vmatpush2.msra.mxu0 0.0
  %106 = vmatprep.subr.mxu0 0.0
  %107 = vmatpush2.msra.mxu0 0.0
  %108 = vmatprep.subr.mxu0 0.0
  %109 = vmatpush2.msra.mxu0 0.0
  %110 = vmatprep.subr.mxu0 0.0
  %111 = vmatpush2.msra.mxu0 0.0
  %112 = vmatprep.subr.mxu0 0.0
  %113 = vmatpush2.msra.mxu0 0.0
  %114 = vmatprep.subr.mxu0 0.0
  %115 = vmatpush2.msra.mxu0 0.0
  %116 = vmatprep.subr.mxu0 0.0
  %117 = vmatpush2.msra.mxu0 0.0
  %118 = vmatprep.subr.mxu0 0.0
  %119 = vmatpush2.msra.mxu0 0.0
  %120 = vmatprep.subr.mxu0 0.0
  %121 = vmatpush2.msra.mxu0 0.0
  %122 = vmatprep.subr.mxu0 0.0
  %123 = vmatpush2.msra.mxu0 0.0
  %124 = vmatprep.mubr.f32.mxu0 0.0
  %125 = vmatmul.mubr.f32.gmra.mxu0 %v49
  %v126 = vpop.f32.mrf.mxu0
  %v127 = vadd.f32 0.0, %v126
  %v128 = vpop.f32.mrf.mxu0
  %129 = vmatprep.mubr.f32.mxu0 0.0
  %130 = vmatmul.mubr.f32.gmra.mxu0 %v52
  %v131 = vpop.f32.mrf.mxu0
  %v132 = vadd.f32 0.0, %v131
  %v133 = vpop.f32.mrf.mxu0
  %134 = vmatprep.mubr.f32.mxu0 0.0
  %135 = vmatmul.mubr.f32.gmra.mxu0 %v55
  %v136 = vpop.f32.mrf.mxu0
  %v137 = vadd.f32 0.0, %v136
  %v138 = vpop.f32.mrf.mxu0
  %139 = vmatprep.mubr.f32.mxu0 0.0
  %140 = vmatmul.mubr.f32.gmra.mxu0 %v58
  %v141 = vpop.f32.mrf.mxu0
  %v142 = vadd.f32 0.0, %v141
  %v143 = vpop.f32.mrf.mxu0
  %144 = vdwg.mxu0
  %v145 = vld [vmem:[%s2] sm:$0xff]
  %v146 = vld [vmem:[%s2 + $0x8] sm:$0xff]
  %v147 = vld [vmem:[%s2 + $0x10] sm:$0xff]
  %v148 = vld [vmem:[%s2 + $0x18] sm:$0xff]
  %v149 = vld [vmem:[%s2 + $0x20] sm:$0xff]
  %v150 = vld [vmem:[%s2 + $0x28] sm:$0xff]
  %v151 = vld [vmem:[%s2 + $0x30] sm:$0xff]
  %v152 = vld [vmem:[%s2 + $0x38] sm:$0xff]
  %v153 = vld [vmem:[%s2 + $0x40] sm:$0xff]
  %v154 = vld [vmem:[%s2 + $0x48] sm:$0xff]
  %v155 = vld [vmem:[%s2 + $0x50] sm:$0xff]
  %v156 = vld [vmem:[%s2 + $0x58] sm:$0xff]
  %v157 = vld [vmem:[%s2 + $0x60] sm:$0xff]
  %v158 = vld [vmem:[%s2 + $0x68] sm:$0xff]
  %v159 = vld [vmem:[%s2 + $0x70] sm:$0xff]
  %v160 = vld [vmem:[%s2 + $0x78] sm:$0xff]
  %v161 = vld [vmem:[%s2 + $0x80] sm:$0xff]
  %v162 = vld [vmem:[%s2 + $0x88] sm:$0xff]
  %v163 = vld [vmem:[%s2 + $0x90] sm:$0xff]
  %v164 = vld [vmem:[%s2 + $0x98] sm:$0xff]
  %v165 = vld [vmem:[%s2 + $0xa0] sm:$0xff]
  %v166 = vld [vmem:[%s2 + $0xa8] sm:$0xff]
  %v167 = vld [vmem:[%s2 + $0xb0] sm:$0xff]
  %v168 = vld [vmem:[%s2 + $0xb8] sm:$0xff]
  %s169 = scalar_lea.vmem %s1, 32
  %v170 = vld [vmem:[%s169] sm:$0xff]
  %v171 = vld [vmem:[%s169 + $0x8] sm:$0xff]
  %v172 = vld [vmem:[%s169 + $0x10] sm:$0xff]
  %v173 = vld [vmem:[%s169 + $0x18] sm:$0xf]
  %v175 = vsel %vm47, %v170, 0
  %v178 = vsel %vm47, %v171, 0
  %v181 = vsel %vm47, %v172, 0
  %v184 = vsel %vm47, %v173, 0
  %186 = vmatprep.subr.mxu0 0.0
  %187 = vmatpush1.msra.mxu0 0.0
  %188 = vmatprep.subr.mxu0 0.0
  %189 = vmatpush1.msra.mxu0 0.0
  %190 = vmatprep.subr.mxu0 0.0
  %191 = vmatpush1.msra.mxu0 0.0
  %192 = vmatprep.subr.mxu0 0.0
  %193 = vmatpush1.msra.mxu0 0.0
  %194 = vmatprep.subr.mxu0 0.0
  %195 = vmatpush1.msra.mxu0 0.0
  %196 = vmatprep.subr.mxu0 0.0
  %197 = vmatpush1.msra.mxu0 0.0
  %198 = vmatprep.subr.mxu0 0.0
  %199 = vmatpush1.msra.mxu0 0.0
  %200 = vmatprep.subr.mxu0 0.0
  %201 = vmatpush1.msra.mxu0 0.0
  %202 = vmatprep.subr.mxu0 0.0
  %203 = vmatpush1.msra.mxu0 %v42
  %204 = vmatprep.subr.mxu0 0.0
  %205 = vmatpush1.msra.mxu0 %v41
  %206 = vmatprep.subr.mxu0 0.0
  %207 = vmatpush1.msra.mxu0 %v40
  %208 = vmatprep.subr.mxu0 0.0
  %209 = vmatpush1.msra.mxu0 %v39
  %210 = vmatprep.subr.mxu0 0.0
  %211 = vmatpush1.msra.mxu0 %v38
  %212 = vmatprep.subr.mxu0 0.0
  %213 = vmatpush1.msra.mxu0 %v37
  %214 = vmatprep.subr.mxu0 0.0
  %215 = vmatpush1.msra.mxu0 %v36
  %216 = vmatprep.subr.mxu0 0.0
  %217 = vmatpush1.msra.mxu0 %v35
  %218 = vmatprep.subr.mxu0 0.0
  %219 = vmatpush2.msra.mxu0 0.0
  %220 = vmatprep.subr.mxu0 0.0
  %221 = vmatpush2.msra.mxu0 0.0
  %222 = vmatprep.subr.mxu0 0.0
  %223 = vmatpush2.msra.mxu0 0.0
  %224 = vmatprep.subr.mxu0 0.0
  %225 = vmatpush2.msra.mxu0 0.0
  %226 = vmatprep.subr.mxu0 0.0
  %227 = vmatpush2.msra.mxu0 0.0
  %228 = vmatprep.subr.mxu0 0.0
  %229 = vmatpush2.msra.mxu0 0.0
  %230 = vmatprep.subr.mxu0 0.0
  %231 = vmatpush2.msra.mxu0 0.0
  %232 = vmatprep.subr.mxu0 0.0
  %233 = vmatpush2.msra.mxu0 0.0
  %234 = vmatprep.subr.mxu0 0.0
  %235 = vmatpush2.msra.mxu0 0.0
  %236 = vmatprep.subr.mxu0 0.0
  %237 = vmatpush2.msra.mxu0 0.0
  %238 = vmatprep.subr.mxu0 0.0
  %239 = vmatpush2.msra.mxu0 0.0
  %240 = vmatprep.subr.mxu0 0.0
  %241 = vmatpush2.msra.mxu0 0.0
  %242 = vmatprep.subr.mxu0 0.0
  %243 = vmatpush2.msra.mxu0 0.0
  %244 = vmatprep.subr.mxu0 0.0
  %245 = vmatpush2.msra.mxu0 0.0
  %246 = vmatprep.subr.mxu0 0.0
  %247 = vmatpush2.msra.mxu0 0.0
  %248 = vmatprep.subr.mxu0 0.0
  %249 = vmatpush2.msra.mxu0 0.0
  %250 = vmatprep.mubr.f32.mxu0 0.0
  %251 = vmatmul.mubr.f32.gmra.mxu0 %v175
  %v252 = vpop.f32.mrf.mxu0
  %v253 = vadd.f32 0.0, %v252
  %v254 = vpop.f32.mrf.mxu0
  %255 = vmatprep.mubr.f32.mxu0 0.0
  %256 = vmatmul.mubr.f32.gmra.mxu0 %v178
  %v257 = vpop.f32.mrf.mxu0
  %v258 = vadd.f32 0.0, %v257
  %v259 = vpop.f32.mrf.mxu0
  %260 = vmatprep.mubr.f32.mxu0 0.0
  %261 = vmatmul.mubr.f32.gmra.mxu0 %v181
  %v262 = vpop.f32.mrf.mxu0
  %v263 = vadd.f32 0.0, %v262
  %v264 = vpop.f32.mrf.mxu0
  %265 = vmatprep.mubr.f32.mxu0 0.0
  %266 = vmatmul.mubr.f32.gmra.mxu0 %v184
  %v267 = vpop.f32.mrf.mxu0
  %v268 = vadd.f32 0.0, %v267
  %v269 = vpop.f32.mrf.mxu0
  %270 = vdwg.mxu0
  %s271 = scalar_lea.vmem %s2, 192
  %v272 = vld [vmem:[%s271] sm:$0xff]
  %v273 = vld [vmem:[%s271 + $0x8] sm:$0xff]
  %v274 = vld [vmem:[%s271 + $0x10] sm:$0xff]
  %v275 = vld [vmem:[%s271 + $0x18] sm:$0xff]
  %v276 = vld [vmem:[%s271 + $0x20] sm:$0xff]
  %v277 = vld [vmem:[%s271 + $0x28] sm:$0xff]
  %v278 = vld [vmem:[%s271 + $0x30] sm:$0xff]
  %v279 = vld [vmem:[%s271 + $0x38] sm:$0xff]
  %v280 = vld [vmem:[%s271 + $0x40] sm:$0xff]
  %v281 = vld [vmem:[%s271 + $0x48] sm:$0xff]
  %v282 = vld [vmem:[%s271 + $0x50] sm:$0xff]
  %v283 = vld [vmem:[%s271 + $0x58] sm:$0xff]
  %v284 = vld [vmem:[%s271 + $0x60] sm:$0xff]
  %v285 = vld [vmem:[%s271 + $0x68] sm:$0xff]
  %v286 = vld [vmem:[%s271 + $0x70] sm:$0xff]
  %v287 = vld [vmem:[%s271 + $0x78] sm:$0xff]
  %v288 = vld [vmem:[%s271 + $0x80] sm:$0xff]
  %v289 = vld [vmem:[%s271 + $0x88] sm:$0xff]
  %v290 = vld [vmem:[%s271 + $0x90] sm:$0xff]
  %v291 = vld [vmem:[%s271 + $0x98] sm:$0xff]
  %v292 = vld [vmem:[%s271 + $0xa0] sm:$0xff]
  %v293 = vld [vmem:[%s271 + $0xa8] sm:$0xff]
  %v294 = vld [vmem:[%s271 + $0xb0] sm:$0xff]
  %v295 = vld [vmem:[%s271 + $0xb8] sm:$0xff]
  %vm296 = vcmask 785408
  %v298 = vsel %vm296, %v253, 0
  %v301 = vsel %vm296, %v258, 0
  %v304 = vsel %vm296, %v263, 0
  %v307 = vsel %vm296, %v268, 0
  %309 = vmatprep.subr.mxu0 0.0
  %310 = vmatpush1.msra.mxu0 0.0
  %311 = vmatprep.subr.mxu0 0.0
  %312 = vmatpush1.msra.mxu0 0.0
  %313 = vmatprep.subr.mxu0 0.0
  %314 = vmatpush1.msra.mxu0 0.0
  %315 = vmatprep.subr.mxu0 0.0
  %316 = vmatpush1.msra.mxu0 0.0
  %317 = vmatprep.subr.mxu0 %v295
  %318 = vmatpush1.msra.mxu0 %v294
  %319 = vmatprep.subr.mxu0 %v293
  %320 = vmatpush1.msra.mxu0 %v292
  %321 = vmatprep.subr.mxu0 %v291
  %322 = vmatpush1.msra.mxu0 %v290
  %323 = vmatprep.subr.mxu0 %v289
  %324 = vmatpush1.msra.mxu0 %v288
  %325 = vmatprep.subr.mxu0 %v287
  %326 = vmatpush1.msra.mxu0 %v286
  %327 = vmatprep.subr.mxu0 %v285
  %328 = vmatpush1.msra.mxu0 %v284
  %329 = vmatprep.subr.mxu0 %v283
  %330 = vmatpush1.msra.mxu0 %v282
  %331 = vmatprep.subr.mxu0 %v281
  %332 = vmatpush1.msra.mxu0 %v280
  %333 = vmatprep.subr.mxu0 %v279
  %334 = vmatpush1.msra.mxu0 %v278
  %335 = vmatprep.subr.mxu0 %v277
  %336 = vmatpush1.msra.mxu0 %v276
  %337 = vmatprep.subr.mxu0 %v275
  %338 = vmatpush1.msra.mxu0 %v274
  %339 = vmatprep.subr.mxu0 %v273
  %340 = vmatpush1.msra.mxu0 %v272
  %341 = vmatprep.subr.mxu0 0.0
  %342 = vmatpush2.msra.mxu0 0.0
  %343 = vmatprep.subr.mxu0 0.0
  %344 = vmatpush2.msra.mxu0 0.0
  %345 = vmatprep.subr.mxu0 0.0
  %346 = vmatpush2.msra.mxu0 0.0
  %347 = vmatprep.subr.mxu0 0.0
  %348 = vmatpush2.msra.mxu0 0.0
  %349 = vmatprep.subr.mxu0 0.0
  %350 = vmatpush2.msra.mxu0 0.0
  %351 = vmatprep.subr.mxu0 0.0
  %352 = vmatpush2.msra.mxu0 0.0
  %353 = vmatprep.subr.mxu0 0.0
  %354 = vmatpush2.msra.mxu0 0.0
  %355 = vmatprep.subr.mxu0 0.0
  %356 = vmatpush2.msra.mxu0 0.0
  %357 = vmatprep.subr.mxu0 0.0
  %358 = vmatpush2.msra.mxu0 0.0
  %359 = vmatprep.subr.mxu0 0.0
  %360 = vmatpush2.msra.mxu0 0.0
  %361 = vmatprep.subr.mxu0 0.0
  %362 = vmatpush2.msra.mxu0 0.0
  %363 = vmatprep.subr.mxu0 0.0
  %364 = vmatpush2.msra.mxu0 0.0
  %365 = vmatprep.subr.mxu0 0.0
  %366 = vmatpush2.msra.mxu0 0.0
  %367 = vmatprep.subr.mxu0 0.0
  %368 = vmatpush2.msra.mxu0 0.0
  %369 = vmatprep.subr.mxu0 0.0
  %370 = vmatpush2.msra.mxu0 0.0
  %371 = vmatprep.subr.mxu0 0.0
  %372 = vmatpush2.msra.mxu0 0.0
  %373 = vmatprep.mubr.f32.mxu0 0.0
  %374 = vmatmul.mubr.f32.gmra.mxu0 %v298
  %v375 = vpop.f32.mrf.mxu0
  %v376 = vadd.f32 0.0, %v375
  %v377 = vpop.f32.mrf.mxu0
  %v378 = vadd.f32 0.0, %v377
  %379 = vmatprep.mubr.f32.mxu0 0.0
  %380 = vmatmul.mubr.f32.gmra.mxu0 %v301
  %v381 = vpop.f32.mrf.mxu0
  %v382 = vadd.f32 0.0, %v381
  %v383 = vpop.f32.mrf.mxu0
  %v384 = vadd.f32 0.0, %v383
  %385 = vmatprep.mubr.f32.mxu0 0.0
  %386 = vmatmul.mubr.f32.gmra.mxu0 %v304
  %v387 = vpop.f32.mrf.mxu0
  %v388 = vadd.f32 0.0, %v387
  %v389 = vpop.f32.mrf.mxu0
  %v390 = vadd.f32 0.0, %v389
  %391 = vmatprep.mubr.f32.mxu0 0.0
  %392 = vmatmul.mubr.f32.gmra.mxu0 %v307
  %v393 = vpop.f32.mrf.mxu0
  %v394 = vadd.f32 0.0, %v393
  %v395 = vpop.f32.mrf.mxu0
  %v396 = vadd.f32 0.0, %v395
  %397 = vdwg.mxu0
  %v399 = vsel %vm296, %v127, 0
  %v402 = vsel %vm296, %v132, 0
  %v405 = vsel %vm296, %v137, 0
  %v408 = vsel %vm296, %v142, 0
  %410 = vmatprep.subr.mxu0 0.0
  %411 = vmatpush1.msra.mxu0 0.0
  %412 = vmatprep.subr.mxu0 0.0
  %413 = vmatpush1.msra.mxu0 0.0
  %414 = vmatprep.subr.mxu0 0.0
  %415 = vmatpush1.msra.mxu0 0.0
  %416 = vmatprep.subr.mxu0 0.0
  %417 = vmatpush1.msra.mxu0 0.0
  %418 = vmatprep.subr.mxu0 %v168
  %419 = vmatpush1.msra.mxu0 %v167
  %420 = vmatprep.subr.mxu0 %v166
  %421 = vmatpush1.msra.mxu0 %v165
  %422 = vmatprep.subr.mxu0 %v164
  %423 = vmatpush1.msra.mxu0 %v163
  %424 = vmatprep.subr.mxu0 %v162
  %425 = vmatpush1.msra.mxu0 %v161
  %426 = vmatprep.subr.mxu0 %v160
  %427 = vmatpush1.msra.mxu0 %v159
  %428 = vmatprep.subr.mxu0 %v158
  %429 = vmatpush1.msra.mxu0 %v157
  %430 = vmatprep.subr.mxu0 %v156
  %431 = vmatpush1.msra.mxu0 %v155
  %432 = vmatprep.subr.mxu0 %v154
  %433 = vmatpush1.msra.mxu0 %v153
  %434 = vmatprep.subr.mxu0 %v152
  %435 = vmatpush1.msra.mxu0 %v151
  %436 = vmatprep.subr.mxu0 %v150
  %437 = vmatpush1.msra.mxu0 %v149
  %438 = vmatprep.subr.mxu0 %v148
  %439 = vmatpush1.msra.mxu0 %v147
  %440 = vmatprep.subr.mxu0 %v146
  %441 = vmatpush1.msra.mxu0 %v145
  %442 = vmatprep.subr.mxu0 0.0
  %443 = vmatpush2.msra.mxu0 0.0
  %444 = vmatprep.subr.mxu0 0.0
  %445 = vmatpush2.msra.mxu0 0.0
  %446 = vmatprep.subr.mxu0 0.0
  %447 = vmatpush2.msra.mxu0 0.0
  %448 = vmatprep.subr.mxu0 0.0
  %449 = vmatpush2.msra.mxu0 0.0
  %450 = vmatprep.subr.mxu0 0.0
  %451 = vmatpush2.msra.mxu0 0.0
  %452 = vmatprep.subr.mxu0 0.0
  %453 = vmatpush2.msra.mxu0 0.0
  %454 = vmatprep.subr.mxu0 0.0
  %455 = vmatpush2.msra.mxu0 0.0
  %456 = vmatprep.subr.mxu0 0.0
  %457 = vmatpush2.msra.mxu0 0.0
  %458 = vmatprep.subr.mxu0 0.0
  %459 = vmatpush2.msra.mxu0 0.0
  %460 = vmatprep.subr.mxu0 0.0
  %461 = vmatpush2.msra.mxu0 0.0
  %462 = vmatprep.subr.mxu0 0.0
  %463 = vmatpush2.msra.mxu0 0.0
  %464 = vmatprep.subr.mxu0 0.0
  %465 = vmatpush2.msra.mxu0 0.0
  %466 = vmatprep.subr.mxu0 0.0
  %467 = vmatpush2.msra.mxu0 0.0
  %468 = vmatprep.subr.mxu0 0.0
  %469 = vmatpush2.msra.mxu0 0.0
  %470 = vmatprep.subr.mxu0 0.0
  %471 = vmatpush2.msra.mxu0 0.0
  %472 = vmatprep.subr.mxu0 0.0
  %473 = vmatpush2.msra.mxu0 0.0
  %474 = vmatprep.mubr.f32.mxu0 0.0
  %475 = vmatmul.mubr.f32.gmra.mxu0 %v399
  %v476 = vpop.f32.mrf.mxu0
  %v477 = vadd.f32 %v376, %v476
  %v478 = vpop.f32.mrf.mxu0
  %v479 = vadd.f32 %v378, %v478
  %480 = vmatprep.mubr.f32.mxu0 0.0
  %481 = vmatmul.mubr.f32.gmra.mxu0 %v402
  %v482 = vpop.f32.mrf.mxu0
  %v483 = vadd.f32 %v382, %v482
  %v484 = vpop.f32.mrf.mxu0
  %v485 = vadd.f32 %v384, %v484
  %486 = vmatprep.mubr.f32.mxu0 0.0
  %487 = vmatmul.mubr.f32.gmra.mxu0 %v405
  %v488 = vpop.f32.mrf.mxu0
  %v489 = vadd.f32 %v388, %v488
  %v490 = vpop.f32.mrf.mxu0
  %v491 = vadd.f32 %v390, %v490
  %492 = vmatprep.mubr.f32.mxu0 0.0
  %493 = vmatmul.mubr.f32.gmra.mxu0 %v408
  %v494 = vpop.f32.mrf.mxu0
  %v495 = vadd.f32 %v394, %v494
  %v496 = vpop.f32.mrf.mxu0
  %v497 = vadd.f32 %v396, %v496
  %498 = vdwg.mxu0
  %s499 = scalar_lea.vmem %s1, 64
  %v500 = vld [vmem:[%s499] sm:$0xff]
  %v501 = vld [vmem:[%s499 + $0x8] sm:$0xff]
  %v502 = vld [vmem:[%s499 + $0x10] sm:$0xff]
  %v503 = vld [vmem:[%s499 + $0x18] sm:$0xf]
  %v505 = vsel %vm47, %v500, 0
  %v508 = vsel %vm47, %v501, 0
  %v511 = vsel %vm47, %v502, 0
  %v514 = vsel %vm47, %v503, 0
  %516 = vmatprep.subr.mxu0 0.0
  %517 = vmatpush1.msra.mxu0 0.0
  %518 = vmatprep.subr.mxu0 0.0
  %519 = vmatpush1.msra.mxu0 0.0
  %520 = vmatprep.subr.mxu0 0.0
  %521 = vmatpush1.msra.mxu0 0.0
  %522 = vmatprep.subr.mxu0 0.0
  %523 = vmatpush1.msra.mxu0 0.0
  %524 = vmatprep.subr.mxu0 0.0
  %525 = vmatpush1.msra.mxu0 0.0
  %526 = vmatprep.subr.mxu0 0.0
  %527 = vmatpush1.msra.mxu0 0.0
  %528 = vmatprep.subr.mxu0 0.0
  %529 = vmatpush1.msra.mxu0 0.0
  %530 = vmatprep.subr.mxu0 0.0
  %531 = vmatpush1.msra.mxu0 0.0
  %532 = vmatprep.subr.mxu0 0.0
  %533 = vmatpush1.msra.mxu0 %v42
  %534 = vmatprep.subr.mxu0 0.0
  %535 = vmatpush1.msra.mxu0 %v41
  %536 = vmatprep.subr.mxu0 0.0
  %537 = vmatpush1.msra.mxu0 %v40
  %538 = vmatprep.subr.mxu0 0.0
  %539 = vmatpush1.msra.mxu0 %v39
  %540 = vmatprep.subr.mxu0 0.0
  %541 = vmatpush1.msra.mxu0 %v38
  %542 = vmatprep.subr.mxu0 0.0
  %543 = vmatpush1.msra.mxu0 %v37
  %544 = vmatprep.subr.mxu0 0.0
  %545 = vmatpush1.msra.mxu0 %v36
  %546 = vmatprep.subr.mxu0 0.0
  %547 = vmatpush1.msra.mxu0 %v35
  %548 = vmatprep.subr.mxu0 0.0
  %549 = vmatpush2.msra.mxu0 0.0
  %550 = vmatprep.subr.mxu0 0.0
  %551 = vmatpush2.msra.mxu0 0.0
  %552 = vmatprep.subr.mxu0 0.0
  %553 = vmatpush2.msra.mxu0 0.0
  %554 = vmatprep.subr.mxu0 0.0
  %555 = vmatpush2.msra.mxu0 0.0
  %556 = vmatprep.subr.mxu0 0.0
  %557 = vmatpush2.msra.mxu0 0.0
  %558 = vmatprep.subr.mxu0 0.0
  %559 = vmatpush2.msra.mxu0 0.0
  %560 = vmatprep.subr.mxu0 0.0
  %561 = vmatpush2.msra.mxu0 0.0
  %562 = vmatprep.subr.mxu0 0.0
  %563 = vmatpush2.msra.mxu0 0.0
  %564 = vmatprep.subr.mxu0 0.0
  %565 = vmatpush2.msra.mxu0 0.0
  %566 = vmatprep.subr.mxu0 0.0
  %567 = vmatpush2.msra.mxu0 0.0
  %568 = vmatprep.subr.mxu0 0.0
  %569 = vmatpush2.msra.mxu0 0.0
  %570 = vmatprep.subr.mxu0 0.0
  %571 = vmatpush2.msra.mxu0 0.0
  %572 = vmatprep.subr.mxu0 0.0
  %573 = vmatpush2.msra.mxu0 0.0
  %574 = vmatprep.subr.mxu0 0.0
  %575 = vmatpush2.msra.mxu0 0.0
  %576 = vmatprep.subr.mxu0 0.0
  %577 = vmatpush2.msra.mxu0 0.0
  %578 = vmatprep.subr.mxu0 0.0
  %579 = vmatpush2.msra.mxu0 0.0
  %580 = vmatprep.mubr.f32.mxu0 0.0
  %581 = vmatmul.mubr.f32.gmra.mxu0 %v505
  %v582 = vpop.f32.mrf.mxu0
  %v583 = vadd.f32 0.0, %v582
  %v584 = vpop.f32.mrf.mxu0
  %585 = vmatprep.mubr.f32.mxu0 0.0
  %586 = vmatmul.mubr.f32.gmra.mxu0 %v508
  %v587 = vpop.f32.mrf.mxu0
  %v588 = vadd.f32 0.0, %v587
  %v589 = vpop.f32.mrf.mxu0
  %590 = vmatprep.mubr.f32.mxu0 0.0
  %591 = vmatmul.mubr.f32.gmra.mxu0 %v511
  %v592 = vpop.f32.mrf.mxu0
  %v593 = vadd.f32 0.0, %v592
  %v594 = vpop.f32.mrf.mxu0
  %595 = vmatprep.mubr.f32.mxu0 0.0
  %596 = vmatmul.mubr.f32.gmra.mxu0 %v514
  %v597 = vpop.f32.mrf.mxu0
  %v598 = vadd.f32 0.0, %v597
  %v599 = vpop.f32.mrf.mxu0
  %600 = vdwg.mxu0
  %s601 = scalar_lea.vmem %s2, 384
  %v602 = vld [vmem:[%s601] sm:$0xff]
  %v603 = vld [vmem:[%s601 + $0x8] sm:$0xff]
  %v604 = vld [vmem:[%s601 + $0x10] sm:$0xff]
  %v605 = vld [vmem:[%s601 + $0x18] sm:$0xff]
  %v606 = vld [vmem:[%s601 + $0x20] sm:$0xff]
  %v607 = vld [vmem:[%s601 + $0x28] sm:$0xff]
  %v608 = vld [vmem:[%s601 + $0x30] sm:$0xff]
  %v609 = vld [vmem:[%s601 + $0x38] sm:$0xff]
  %v610 = vld [vmem:[%s601 + $0x40] sm:$0xff]
  %v611 = vld [vmem:[%s601 + $0x48] sm:$0xff]
  %v612 = vld [vmem:[%s601 + $0x50] sm:$0xff]
  %v613 = vld [vmem:[%s601 + $0x58] sm:$0xff]
  %v614 = vld [vmem:[%s601 + $0x60] sm:$0xff]
  %v615 = vld [vmem:[%s601 + $0x68] sm:$0xff]
  %v616 = vld [vmem:[%s601 + $0x70] sm:$0xff]
  %v617 = vld [vmem:[%s601 + $0x78] sm:$0xff]
  %v618 = vld [vmem:[%s601 + $0x80] sm:$0xff]
  %v619 = vld [vmem:[%s601 + $0x88] sm:$0xff]
  %v620 = vld [vmem:[%s601 + $0x90] sm:$0xff]
  %v621 = vld [vmem:[%s601 + $0x98] sm:$0xff]
  %v622 = vld [vmem:[%s601 + $0xa0] sm:$0xff]
  %v623 = vld [vmem:[%s601 + $0xa8] sm:$0xff]
  %v624 = vld [vmem:[%s601 + $0xb0] sm:$0xff]
  %v625 = vld [vmem:[%s601 + $0xb8] sm:$0xff]
  %v627 = vsel %vm296, %v583, 0
  %v630 = vsel %vm296, %v588, 0
  %v633 = vsel %vm296, %v593, 0
  %v636 = vsel %vm296, %v598, 0
  %638 = vmatprep.subr.mxu0 0.0
  %639 = vmatpush1.msra.mxu0 0.0
  %640 = vmatprep.subr.mxu0 0.0
  %641 = vmatpush1.msra.mxu0 0.0
  %642 = vmatprep.subr.mxu0 0.0
  %643 = vmatpush1.msra.mxu0 0.0
  %644 = vmatprep.subr.mxu0 0.0
  %645 = vmatpush1.msra.mxu0 0.0
  %646 = vmatprep.subr.mxu0 %v625
  %647 = vmatpush1.msra.mxu0 %v624
  %648 = vmatprep.subr.mxu0 %v623
  %649 = vmatpush1.msra.mxu0 %v622
  %650 = vmatprep.subr.mxu0 %v621
  %651 = vmatpush1.msra.mxu0 %v620
  %652 = vmatprep.subr.mxu0 %v619
  %653 = vmatpush1.msra.mxu0 %v618
  %654 = vmatprep.subr.mxu0 %v617
  %655 = vmatpush1.msra.mxu0 %v616
  %656 = vmatprep.subr.mxu0 %v615
  %657 = vmatpush1.msra.mxu0 %v614
  %658 = vmatprep.subr.mxu0 %v613
  %659 = vmatpush1.msra.mxu0 %v612
  %660 = vmatprep.subr.mxu0 %v611
  %661 = vmatpush1.msra.mxu0 %v610
  %662 = vmatprep.subr.mxu0 %v609
  %663 = vmatpush1.msra.mxu0 %v608
  %664 = vmatprep.subr.mxu0 %v607
  %665 = vmatpush1.msra.mxu0 %v606
  %666 = vmatprep.subr.mxu0 %v605
  %667 = vmatpush1.msra.mxu0 %v604
  %668 = vmatprep.subr.mxu0 %v603
  %669 = vmatpush1.msra.mxu0 %v602
  %670 = vmatprep.subr.mxu0 0.0
  %671 = vmatpush2.msra.mxu0 0.0
  %672 = vmatprep.subr.mxu0 0.0
  %673 = vmatpush2.msra.mxu0 0.0
  %674 = vmatprep.subr.mxu0 0.0
  %675 = vmatpush2.msra.mxu0 0.0
  %676 = vmatprep.subr.mxu0 0.0
  %677 = vmatpush2.msra.mxu0 0.0
  %678 = vmatprep.subr.mxu0 0.0
  %679 = vmatpush2.msra.mxu0 0.0
  %680 = vmatprep.subr.mxu0 0.0
  %681 = vmatpush2.msra.mxu0 0.0
  %682 = vmatprep.subr.mxu0 0.0
  %683 = vmatpush2.msra.mxu0 0.0
  %684 = vmatprep.subr.mxu0 0.0
  %685 = vmatpush2.msra.mxu0 0.0
  %686 = vmatprep.subr.mxu0 0.0
  %687 = vmatpush2.msra.mxu0 0.0
  %688 = vmatprep.subr.mxu0 0.0
  %689 = vmatpush2.msra.mxu0 0.0
  %690 = vmatprep.subr.mxu0 0.0
  %691 = vmatpush2.msra.mxu0 0.0
  %692 = vmatprep.subr.mxu0 0.0
  %693 = vmatpush2.msra.mxu0 0.0
  %694 = vmatprep.subr.mxu0 0.0
  %695 = vmatpush2.msra.mxu0 0.0
  %696 = vmatprep.subr.mxu0 0.0
  %697 = vmatpush2.msra.mxu0 0.0
  %698 = vmatprep.subr.mxu0 0.0
  %699 = vmatpush2.msra.mxu0 0.0
  %700 = vmatprep.subr.mxu0 0.0
  %701 = vmatpush2.msra.mxu0 0.0
  %702 = vmatprep.mubr.f32.mxu0 0.0
  %703 = vmatmul.mubr.f32.gmra.mxu0 %v627
  %v704 = vpop.f32.mrf.mxu0
  %v705 = vadd.f32 0.0, %v704
  %v706 = vpop.f32.mrf.mxu0
  %v707 = vadd.f32 0.0, %v706
  %708 = vmatprep.mubr.f32.mxu0 0.0
  %709 = vmatmul.mubr.f32.gmra.mxu0 %v630
  %v710 = vpop.f32.mrf.mxu0
  %v711 = vadd.f32 0.0, %v710
  %v712 = vpop.f32.mrf.mxu0
  %v713 = vadd.f32 0.0, %v712
  %714 = vmatprep.mubr.f32.mxu0 0.0
  %715 = vmatmul.mubr.f32.gmra.mxu0 %v633
  %v716 = vpop.f32.mrf.mxu0
  %v717 = vadd.f32 0.0, %v716
  %v718 = vpop.f32.mrf.mxu0
  %v719 = vadd.f32 0.0, %v718
  %720 = vmatprep.mubr.f32.mxu0 0.0
  %721 = vmatmul.mubr.f32.gmra.mxu0 %v636
  %v722 = vpop.f32.mrf.mxu0
  %v723 = vadd.f32 0.0, %v722
  %v724 = vpop.f32.mrf.mxu0
  %v725 = vadd.f32 0.0, %v724
  %726 = vdwg.mxu0
  %v727 = vadd.f32 %v477, %v705
  %v728 = vadd.f32 %v479, %v707
  %v729 = vadd.f32 %v483, %v711
  %v730 = vadd.f32 %v485, %v713
  %v731 = vadd.f32 %v489, %v717
  %v732 = vadd.f32 %v491, %v719
  %v733 = vadd.f32 %v495, %v723
  %v734 = vadd.f32 %v497, %v725
  %s735 = scalar_lea.vmem %s1, 96
  %v736 = vld [vmem:[%s735] sm:$0xff]
  %v737 = vld [vmem:[%s735 + $0x8] sm:$0xff]
  %v738 = vld [vmem:[%s735 + $0x10] sm:$0xff]
  %v739 = vld [vmem:[%s735 + $0x18] sm:$0xf]
  %v741 = vsel %vm47, %v736, 0
  %v744 = vsel %vm47, %v737, 0
  %v747 = vsel %vm47, %v738, 0
  %v750 = vsel %vm47, %v739, 0
  %752 = vmatprep.subr.mxu0 0.0
  %753 = vmatpush1.msra.mxu0 0.0
  %754 = vmatprep.subr.mxu0 0.0
  %755 = vmatpush1.msra.mxu0 0.0
  %756 = vmatprep.subr.mxu0 0.0
  %757 = vmatpush1.msra.mxu0 0.0
  %758 = vmatprep.subr.mxu0 0.0
  %759 = vmatpush1.msra.mxu0 0.0
  %760 = vmatprep.subr.mxu0 0.0
  %761 = vmatpush1.msra.mxu0 0.0
  %762 = vmatprep.subr.mxu0 0.0
  %763 = vmatpush1.msra.mxu0 0.0
  %764 = vmatprep.subr.mxu0 0.0
  %765 = vmatpush1.msra.mxu0 0.0
  %766 = vmatprep.subr.mxu0 0.0
  %767 = vmatpush1.msra.mxu0 0.0
  %768 = vmatprep.subr.mxu0 0.0
  %769 = vmatpush1.msra.mxu0 %v42
  %770 = vmatprep.subr.mxu0 0.0
  %771 = vmatpush1.msra.mxu0 %v41
  %772 = vmatprep.subr.mxu0 0.0
  %773 = vmatpush1.msra.mxu0 %v40
  %774 = vmatprep.subr.mxu0 0.0
  %775 = vmatpush1.msra.mxu0 %v39
  %776 = vmatprep.subr.mxu0 0.0
  %777 = vmatpush1.msra.mxu0 %v38
  %778 = vmatprep.subr.mxu0 0.0
  %779 = vmatpush1.msra.mxu0 %v37
  %780 = vmatprep.subr.mxu0 0.0
  %781 = vmatpush1.msra.mxu0 %v36
  %782 = vmatprep.subr.mxu0 0.0
  %783 = vmatpush1.msra.mxu0 %v35
  %784 = vmatprep.subr.mxu0 0.0
  %785 = vmatpush2.msra.mxu0 0.0
  %786 = vmatprep.subr.mxu0 0.0
  %787 = vmatpush2.msra.mxu0 0.0
  %788 = vmatprep.subr.mxu0 0.0
  %789 = vmatpush2.msra.mxu0 0.0
  %790 = vmatprep.subr.mxu0 0.0
  %791 = vmatpush2.msra.mxu0 0.0
  %792 = vmatprep.subr.mxu0 0.0
  %793 = vmatpush2.msra.mxu0 0.0
  %794 = vmatprep.subr.mxu0 0.0
  %795 = vmatpush2.msra.mxu0 0.0
  %796 = vmatprep.subr.mxu0 0.0
  %797 = vmatpush2.msra.mxu0 0.0
  %798 = vmatprep.subr.mxu0 0.0
  %799 = vmatpush2.msra.mxu0 0.0
  %800 = vmatprep.subr.mxu0 0.0
  %801 = vmatpush2.msra.mxu0 0.0
  %802 = vmatprep.subr.mxu0 0.0
  %803 = vmatpush2.msra.mxu0 0.0
  %804 = vmatprep.subr.mxu0 0.0
  %805 = vmatpush2.msra.mxu0 0.0
  %806 = vmatprep.subr.mxu0 0.0
  %807 = vmatpush2.msra.mxu0 0.0
  %808 = vmatprep.subr.mxu0 0.0
  %809 = vmatpush2.msra.mxu0 0.0
  %810 = vmatprep.subr.mxu0 0.0
  %811 = vmatpush2.msra.mxu0 0.0
  %812 = vmatprep.subr.mxu0 0.0
  %813 = vmatpush2.msra.mxu0 0.0
  %814 = vmatprep.subr.mxu0 0.0
  %815 = vmatpush2.msra.mxu0 0.0
  %816 = vmatprep.mubr.f32.mxu0 0.0
  %817 = vmatmul.mubr.f32.gmra.mxu0 %v741
  %v818 = vpop.f32.mrf.mxu0
  %v819 = vadd.f32 0.0, %v818
  %v820 = vpop.f32.mrf.mxu0
  %821 = vmatprep.mubr.f32.mxu0 0.0
  %822 = vmatmul.mubr.f32.gmra.mxu0 %v744
  %v823 = vpop.f32.mrf.mxu0
  %v824 = vadd.f32 0.0, %v823
  %v825 = vpop.f32.mrf.mxu0
  %826 = vmatprep.mubr.f32.mxu0 0.0
  %827 = vmatmul.mubr.f32.gmra.mxu0 %v747
  %v828 = vpop.f32.mrf.mxu0
  %v829 = vadd.f32 0.0, %v828
  %v830 = vpop.f32.mrf.mxu0
  %831 = vmatprep.mubr.f32.mxu0 0.0
  %832 = vmatmul.mubr.f32.gmra.mxu0 %v750
  %v833 = vpop.f32.mrf.mxu0
  %v834 = vadd.f32 0.0, %v833
  %v835 = vpop.f32.mrf.mxu0
  %836 = vdwg.mxu0
  %s837 = scalar_lea.vmem %s2, 576
  %v838 = vld [vmem:[%s837] sm:$0xff]
  %v839 = vld [vmem:[%s837 + $0x8] sm:$0xff]
  %v840 = vld [vmem:[%s837 + $0x10] sm:$0xff]
  %v841 = vld [vmem:[%s837 + $0x18] sm:$0xff]
  %v842 = vld [vmem:[%s837 + $0x20] sm:$0xff]
  %v843 = vld [vmem:[%s837 + $0x28] sm:$0xff]
  %v844 = vld [vmem:[%s837 + $0x30] sm:$0xff]
  %v845 = vld [vmem:[%s837 + $0x38] sm:$0xff]
  %v846 = vld [vmem:[%s837 + $0x40] sm:$0xff]
  %v847 = vld [vmem:[%s837 + $0x48] sm:$0xff]
  %v848 = vld [vmem:[%s837 + $0x50] sm:$0xff]
  %v849 = vld [vmem:[%s837 + $0x58] sm:$0xff]
  %v850 = vld [vmem:[%s837 + $0x60] sm:$0xff]
  %v851 = vld [vmem:[%s837 + $0x68] sm:$0xff]
  %v852 = vld [vmem:[%s837 + $0x70] sm:$0xff]
  %v853 = vld [vmem:[%s837 + $0x78] sm:$0xff]
  %v854 = vld [vmem:[%s837 + $0x80] sm:$0xff]
  %v855 = vld [vmem:[%s837 + $0x88] sm:$0xff]
  %v856 = vld [vmem:[%s837 + $0x90] sm:$0xff]
  %v857 = vld [vmem:[%s837 + $0x98] sm:$0xff]
  %v858 = vld [vmem:[%s837 + $0xa0] sm:$0xff]
  %v859 = vld [vmem:[%s837 + $0xa8] sm:$0xff]
  %v860 = vld [vmem:[%s837 + $0xb0] sm:$0xff]
  %v861 = vld [vmem:[%s837 + $0xb8] sm:$0xff]
  %v863 = vsel %vm296, %v819, 0
  %v866 = vsel %vm296, %v824, 0
  %v869 = vsel %vm296, %v829, 0
  %v872 = vsel %vm296, %v834, 0
  %874 = vmatprep.subr.mxu0 0.0
  %875 = vmatpush1.msra.mxu0 0.0
  %876 = vmatprep.subr.mxu0 0.0
  %877 = vmatpush1.msra.mxu0 0.0
  %878 = vmatprep.subr.mxu0 0.0
  %879 = vmatpush1.msra.mxu0 0.0
  %880 = vmatprep.subr.mxu0 0.0
  %881 = vmatpush1.msra.mxu0 0.0
  %882 = vmatprep.subr.mxu0 %v861
  %883 = vmatpush1.msra.mxu0 %v860
  %884 = vmatprep.subr.mxu0 %v859
  %885 = vmatpush1.msra.mxu0 %v858
  %886 = vmatprep.subr.mxu0 %v857
  %887 = vmatpush1.msra.mxu0 %v856
  %888 = vmatprep.subr.mxu0 %v855
  %889 = vmatpush1.msra.mxu0 %v854
  %890 = vmatprep.subr.mxu0 %v853
  %891 = vmatpush1.msra.mxu0 %v852
  %892 = vmatprep.subr.mxu0 %v851
  %893 = vmatpush1.msra.mxu0 %v850
  %894 = vmatprep.subr.mxu0 %v849
  %895 = vmatpush1.msra.mxu0 %v848
  %896 = vmatprep.subr.mxu0 %v847
  %897 = vmatpush1.msra.mxu0 %v846
  %898 = vmatprep.subr.mxu0 %v845
  %899 = vmatpush1.msra.mxu0 %v844
  %900 = vmatprep.subr.mxu0 %v843
  %901 = vmatpush1.msra.mxu0 %v842
  %902 = vmatprep.subr.mxu0 %v841
  %903 = vmatpush1.msra.mxu0 %v840
  %904 = vmatprep.subr.mxu0 %v839
  %905 = vmatpush1.msra.mxu0 %v838
  %906 = vmatprep.subr.mxu0 0.0
  %907 = vmatpush2.msra.mxu0 0.0
  %908 = vmatprep.subr.mxu0 0.0
  %909 = vmatpush2.msra.mxu0 0.0
  %910 = vmatprep.subr.mxu0 0.0
  %911 = vmatpush2.msra.mxu0 0.0
  %912 = vmatprep.subr.mxu0 0.0
  %913 = vmatpush2.msra.mxu0 0.0
  %914 = vmatprep.subr.mxu0 0.0
  %915 = vmatpush2.msra.mxu0 0.0
  %916 = vmatprep.subr.mxu0 0.0
  %917 = vmatpush2.msra.mxu0 0.0
  %918 = vmatprep.subr.mxu0 0.0
  %919 = vmatpush2.msra.mxu0 0.0
  %920 = vmatprep.subr.mxu0 0.0
  %921 = vmatpush2.msra.mxu0 0.0
  %922 = vmatprep.subr.mxu0 0.0
  %923 = vmatpush2.msra.mxu0 0.0
  %924 = vmatprep.subr.mxu0 0.0
  %925 = vmatpush2.msra.mxu0 0.0
  %926 = vmatprep.subr.mxu0 0.0
  %927 = vmatpush2.msra.mxu0 0.0
  %928 = vmatprep.subr.mxu0 0.0
  %929 = vmatpush2.msra.mxu0 0.0
  %930 = vmatprep.subr.mxu0 0.0
  %931 = vmatpush2.msra.mxu0 0.0
  %932 = vmatprep.subr.mxu0 0.0
  %933 = vmatpush2.msra.mxu0 0.0
  %934 = vmatprep.subr.mxu0 0.0
  %935 = vmatpush2.msra.mxu0 0.0
  %936 = vmatprep.subr.mxu0 0.0
  %937 = vmatpush2.msra.mxu0 0.0
  %938 = vmatprep.mubr.f32.mxu0 0.0
  %939 = vmatmul.mubr.f32.gmra.mxu0 %v863
  %v940 = vpop.f32.mrf.mxu0
  %v941 = vadd.f32 0.0, %v940
  %v942 = vpop.f32.mrf.mxu0
  %v943 = vadd.f32 0.0, %v942
  %944 = vmatprep.mubr.f32.mxu0 0.0
  %945 = vmatmul.mubr.f32.gmra.mxu0 %v866
  %v946 = vpop.f32.mrf.mxu0
  %v947 = vadd.f32 0.0, %v946
  %v948 = vpop.f32.mrf.mxu0
  %v949 = vadd.f32 0.0, %v948
  %950 = vmatprep.mubr.f32.mxu0 0.0
  %951 = vmatmul.mubr.f32.gmra.mxu0 %v869
  %v952 = vpop.f32.mrf.mxu0
  %v953 = vadd.f32 0.0, %v952
  %v954 = vpop.f32.mrf.mxu0
  %v955 = vadd.f32 0.0, %v954
  %956 = vmatprep.mubr.f32.mxu0 0.0
  %957 = vmatmul.mubr.f32.gmra.mxu0 %v872
  %v958 = vpop.f32.mrf.mxu0
  %v959 = vadd.f32 0.0, %v958
  %v960 = vpop.f32.mrf.mxu0
  %v961 = vadd.f32 0.0, %v960
  %962 = vdwg.mxu0
  %v963 = vadd.f32 %v727, %v941
  %v964 = vadd.f32 %v728, %v943
  %v965 = vadd.f32 %v729, %v947
  %v966 = vadd.f32 %v730, %v949
  %v967 = vadd.f32 %v731, %v953
  %v968 = vadd.f32 %v732, %v955
  %v969 = vadd.f32 %v733, %v959
  %v970 = vadd.f32 %v734, %v961
  %s971 = scalar_lea.vmem %s1, 128
  %v972 = vld [vmem:[%s971] sm:$0xff]
  %v973 = vld [vmem:[%s971 + $0x8] sm:$0xff]
  %v974 = vld [vmem:[%s971 + $0x10] sm:$0xff]
  %v975 = vld [vmem:[%s971 + $0x18] sm:$0xf]
  %v977 = vsel %vm47, %v972, 0
  %v980 = vsel %vm47, %v973, 0
  %v983 = vsel %vm47, %v974, 0
  %v986 = vsel %vm47, %v975, 0
  %988 = vmatprep.subr.mxu0 0.0
  %989 = vmatpush1.msra.mxu0 0.0
  %990 = vmatprep.subr.mxu0 0.0
  %991 = vmatpush1.msra.mxu0 0.0
  %992 = vmatprep.subr.mxu0 0.0
  %993 = vmatpush1.msra.mxu0 0.0
  %994 = vmatprep.subr.mxu0 0.0
  %995 = vmatpush1.msra.mxu0 0.0
  %996 = vmatprep.subr.mxu0 0.0
  %997 = vmatpush1.msra.mxu0 0.0
  %998 = vmatprep.subr.mxu0 0.0
  %999 = vmatpush1.msra.mxu0 0.0
  %1000 = vmatprep.subr.mxu0 0.0
  %1001 = vmatpush1.msra.mxu0 0.0
  %1002 = vmatprep.subr.mxu0 0.0
  %1003 = vmatpush1.msra.mxu0 0.0
  %1004 = vmatprep.subr.mxu0 0.0
  %1005 = vmatpush1.msra.mxu0 %v42
  %1006 = vmatprep.subr.mxu0 0.0
  %1007 = vmatpush1.msra.mxu0 %v41
  %1008 = vmatprep.subr.mxu0 0.0
  %1009 = vmatpush1.msra.mxu0 %v40
  %1010 = vmatprep.subr.mxu0 0.0
  %1011 = vmatpush1.msra.mxu0 %v39
  %1012 = vmatprep.subr.mxu0 0.0
  %1013 = vmatpush1.msra.mxu0 %v38
  %1014 = vmatprep.subr.mxu0 0.0
  %1015 = vmatpush1.msra.mxu0 %v37
  %1016 = vmatprep.subr.mxu0 0.0
  %1017 = vmatpush1.msra.mxu0 %v36
  %1018 = vmatprep.subr.mxu0 0.0
  %1019 = vmatpush1.msra.mxu0 %v35
  %1020 = vmatprep.subr.mxu0 0.0
  %1021 = vmatpush2.msra.mxu0 0.0
  %1022 = vmatprep.subr.mxu0 0.0
  %1023 = vmatpush2.msra.mxu0 0.0
  %1024 = vmatprep.subr.mxu0 0.0
  %1025 = vmatpush2.msra.mxu0 0.0
  %1026 = vmatprep.subr.mxu0 0.0
  %1027 = vmatpush2.msra.mxu0 0.0
  %1028 = vmatprep.subr.mxu0 0.0
  %1029 = vmatpush2.msra.mxu0 0.0
  %1030 = vmatprep.subr.mxu0 0.0
  %1031 = vmatpush2.msra.mxu0 0.0
  %1032 = vmatprep.subr.mxu0 0.0
  %1033 = vmatpush2.msra.mxu0 0.0
  %1034 = vmatprep.subr.mxu0 0.0
  %1035 = vmatpush2.msra.mxu0 0.0
  %1036 = vmatprep.subr.mxu0 0.0
  %1037 = vmatpush2.msra.mxu0 0.0
  %1038 = vmatprep.subr.mxu0 0.0
  %1039 = vmatpush2.msra.mxu0 0.0
  %1040 = vmatprep.subr.mxu0 0.0
  %1041 = vmatpush2.msra.mxu0 0.0
  %1042 = vmatprep.subr.mxu0 0.0
  %1043 = vmatpush2.msra.mxu0 0.0
  %1044 = vmatprep.subr.mxu0 0.0
  %1045 = vmatpush2.msra.mxu0 0.0
  %1046 = vmatprep.subr.mxu0 0.0
  %1047 = vmatpush2.msra.mxu0 0.0
  %1048 = vmatprep.subr.mxu0 0.0
  %1049 = vmatpush2.msra.mxu0 0.0
  %1050 = vmatprep.subr.mxu0 0.0
  %1051 = vmatpush2.msra.mxu0 0.0
  %1052 = vmatprep.mubr.f32.mxu0 0.0
  %1053 = vmatmul.mubr.f32.gmra.mxu0 %v977
  %v1054 = vpop.f32.mrf.mxu0
  %v1055 = vadd.f32 0.0, %v1054
  %v1056 = vpop.f32.mrf.mxu0
  %1057 = vmatprep.mubr.f32.mxu0 0.0
  %1058 = vmatmul.mubr.f32.gmra.mxu0 %v980
  %v1059 = vpop.f32.mrf.mxu0
  %v1060 = vadd.f32 0.0, %v1059
  %v1061 = vpop.f32.mrf.mxu0
  %1062 = vmatprep.mubr.f32.mxu0 0.0
  %1063 = vmatmul.mubr.f32.gmra.mxu0 %v983
  %v1064 = vpop.f32.mrf.mxu0
  %v1065 = vadd.f32 0.0, %v1064
  %v1066 = vpop.f32.mrf.mxu0
  %1067 = vmatprep.mubr.f32.mxu0 0.0
  %1068 = vmatmul.mubr.f32.gmra.mxu0 %v986
  %v1069 = vpop.f32.mrf.mxu0
  %v1070 = vadd.f32 0.0, %v1069
  %v1071 = vpop.f32.mrf.mxu0
  %1072 = vdwg.mxu0
  %s1073 = scalar_lea.vmem %s2, 768
  %v1074 = vld [vmem:[%s1073] sm:$0xff]
  %v1075 = vld [vmem:[%s1073 + $0x8] sm:$0xff]
  %v1076 = vld [vmem:[%s1073 + $0x10] sm:$0xff]
  %v1077 = vld [vmem:[%s1073 + $0x18] sm:$0xff]
  %v1078 = vld [vmem:[%s1073 + $0x20] sm:$0xff]
  %v1079 = vld [vmem:[%s1073 + $0x28] sm:$0xff]
  %v1080 = vld [vmem:[%s1073 + $0x30] sm:$0xff]
  %v1081 = vld [vmem:[%s1073 + $0x38] sm:$0xff]
  %v1082 = vld [vmem:[%s1073 + $0x40] sm:$0xff]
  %v1083 = vld [vmem:[%s1073 + $0x48] sm:$0xff]
  %v1084 = vld [vmem:[%s1073 + $0x50] sm:$0xff]
  %v1085 = vld [vmem:[%s1073 + $0x58] sm:$0xff]
  %v1086 = vld [vmem:[%s1073 + $0x60] sm:$0xff]
  %v1087 = vld [vmem:[%s1073 + $0x68] sm:$0xff]
  %v1088 = vld [vmem:[%s1073 + $0x70] sm:$0xff]
  %v1089 = vld [vmem:[%s1073 + $0x78] sm:$0xff]
  %v1090 = vld [vmem:[%s1073 + $0x80] sm:$0xff]
  %v1091 = vld [vmem:[%s1073 + $0x88] sm:$0xff]
  %v1092 = vld [vmem:[%s1073 + $0x90] sm:$0xff]
  %v1093 = vld [vmem:[%s1073 + $0x98] sm:$0xff]
  %v1094 = vld [vmem:[%s1073 + $0xa0] sm:$0xff]
  %v1095 = vld [vmem:[%s1073 + $0xa8] sm:$0xff]
  %v1096 = vld [vmem:[%s1073 + $0xb0] sm:$0xff]
  %v1097 = vld [vmem:[%s1073 + $0xb8] sm:$0xff]
  %v1099 = vsel %vm296, %v1055, 0
  %v1102 = vsel %vm296, %v1060, 0
  %v1105 = vsel %vm296, %v1065, 0
  %v1108 = vsel %vm296, %v1070, 0
  %1110 = vmatprep.subr.mxu0 0.0
  %1111 = vmatpush1.msra.mxu0 0.0
  %1112 = vmatprep.subr.mxu0 0.0
  %1113 = vmatpush1.msra.mxu0 0.0
  %1114 = vmatprep.subr.mxu0 0.0
  %1115 = vmatpush1.msra.mxu0 0.0
  %1116 = vmatprep.subr.mxu0 0.0
  %1117 = vmatpush1.msra.mxu0 0.0
  %1118 = vmatprep.subr.mxu0 %v1097
  %1119 = vmatpush1.msra.mxu0 %v1096
  %1120 = vmatprep.subr.mxu0 %v1095
  %1121 = vmatpush1.msra.mxu0 %v1094
  %1122 = vmatprep.subr.mxu0 %v1093
  %1123 = vmatpush1.msra.mxu0 %v1092
  %1124 = vmatprep.subr.mxu0 %v1091
  %1125 = vmatpush1.msra.mxu0 %v1090
  %1126 = vmatprep.subr.mxu0 %v1089
  %1127 = vmatpush1.msra.mxu0 %v1088
  %1128 = vmatprep.subr.mxu0 %v1087
  %1129 = vmatpush1.msra.mxu0 %v1086
  %1130 = vmatprep.subr.mxu0 %v1085
  %1131 = vmatpush1.msra.mxu0 %v1084
  %1132 = vmatprep.subr.mxu0 %v1083
  %1133 = vmatpush1.msra.mxu0 %v1082
  %1134 = vmatprep.subr.mxu0 %v1081
  %1135 = vmatpush1.msra.mxu0 %v1080
  %1136 = vmatprep.subr.mxu0 %v1079
  %1137 = vmatpush1.msra.mxu0 %v1078
  %1138 = vmatprep.subr.mxu0 %v1077
  %1139 = vmatpush1.msra.mxu0 %v1076
  %1140 = vmatprep.subr.mxu0 %v1075
  %1141 = vmatpush1.msra.mxu0 %v1074
  %1142 = vmatprep.subr.mxu0 0.0
  %1143 = vmatpush2.msra.mxu0 0.0
  %1144 = vmatprep.subr.mxu0 0.0
  %1145 = vmatpush2.msra.mxu0 0.0
  %1146 = vmatprep.subr.mxu0 0.0
  %1147 = vmatpush2.msra.mxu0 0.0
  %1148 = vmatprep.subr.mxu0 0.0
  %1149 = vmatpush2.msra.mxu0 0.0
  %1150 = vmatprep.subr.mxu0 0.0
  %1151 = vmatpush2.msra.mxu0 0.0
  %1152 = vmatprep.subr.mxu0 0.0
  %1153 = vmatpush2.msra.mxu0 0.0
  %1154 = vmatprep.subr.mxu0 0.0
  %1155 = vmatpush2.msra.mxu0 0.0
  %1156 = vmatprep.subr.mxu0 0.0
  %1157 = vmatpush2.msra.mxu0 0.0
  %1158 = vmatprep.subr.mxu0 0.0
  %1159 = vmatpush2.msra.mxu0 0.0
  %1160 = vmatprep.subr.mxu0 0.0
  %1161 = vmatpush2.msra.mxu0 0.0
  %1162 = vmatprep.subr.mxu0 0.0
  %1163 = vmatpush2.msra.mxu0 0.0
  %1164 = vmatprep.subr.mxu0 0.0
  %1165 = vmatpush2.msra.mxu0 0.0
  %1166 = vmatprep.subr.mxu0 0.0
  %1167 = vmatpush2.msra.mxu0 0.0
  %1168 = vmatprep.subr.mxu0 0.0
  %1169 = vmatpush2.msra.mxu0 0.0
  %1170 = vmatprep.subr.mxu0 0.0
  %1171 = vmatpush2.msra.mxu0 0.0
  %1172 = vmatprep.subr.mxu0 0.0
  %1173 = vmatpush2.msra.mxu0 0.0
  %1174 = vmatprep.mubr.f32.mxu0 0.0
  %1175 = vmatmul.mubr.f32.gmra.mxu0 %v1099
  %v1176 = vpop.f32.mrf.mxu0
  %v1177 = vadd.f32 0.0, %v1176
  %v1178 = vpop.f32.mrf.mxu0
  %v1179 = vadd.f32 0.0, %v1178
  %1180 = vmatprep.mubr.f32.mxu0 0.0
  %1181 = vmatmul.mubr.f32.gmra.mxu0 %v1102
  %v1182 = vpop.f32.mrf.mxu0
  %v1183 = vadd.f32 0.0, %v1182
  %v1184 = vpop.f32.mrf.mxu0
  %v1185 = vadd.f32 0.0, %v1184
  %1186 = vmatprep.mubr.f32.mxu0 0.0
  %1187 = vmatmul.mubr.f32.gmra.mxu0 %v1105
  %v1188 = vpop.f32.mrf.mxu0
  %v1189 = vadd.f32 0.0, %v1188
  %v1190 = vpop.f32.mrf.mxu0
  %v1191 = vadd.f32 0.0, %v1190
  %1192 = vmatprep.mubr.f32.mxu0 0.0
  %1193 = vmatmul.mubr.f32.gmra.mxu0 %v1108
  %v1194 = vpop.f32.mrf.mxu0
  %v1195 = vadd.f32 0.0, %v1194
  %v1196 = vpop.f32.mrf.mxu0
  %v1197 = vadd.f32 0.0, %v1196
  %1198 = vdwg.mxu0
  %v1199 = vadd.f32 %v963, %v1177
  %v1200 = vadd.f32 %v964, %v1179
  %v1201 = vadd.f32 %v965, %v1183
  %v1202 = vadd.f32 %v966, %v1185
  %v1203 = vadd.f32 %v967, %v1189
  %v1204 = vadd.f32 %v968, %v1191
  %v1205 = vadd.f32 %v969, %v1195
  %v1206 = vadd.f32 %v970, %v1197
  %v1207 = vld [vmem:[%s3] sm:$0x3]
  %v1209 = vlaneseq
  %v1210 = vshrl.u32 %v1209, 7
  %v1211 = vsub.s32 0, %v1210
  %v1212 = vrot.slane %v1207, %v1211
  %v1213 = vlaneseq
  %v1214 = vshrl.u32 %v1213, 7
  %v1215 = vsub.s32 1, %v1214
  %v1216 = vrot.slane %v1207, %v1215
  %v1219 = vadd.f32 %v1199, %v1212
  %v1220 = vadd.f32 %v1200, %v1216
  %v1221 = vadd.f32 %v1201, %v1212
  %v1222 = vadd.f32 %v1202, %v1216
  %v1223 = vadd.f32 %v1203, %v1212
  %v1224 = vadd.f32 %v1204, %v1216
  %v1225 = vadd.f32 %v1205, %v1212
  %v1226 = vadd.f32 %v1206, %v1216
  %v1227 = vmax.f32 %v1219, 0.0
  %v1228 = vmax.f32 %v1220, 0.0
  %v1229 = vmax.f32 %v1221, 0.0
  %v1230 = vmax.f32 %v1222, 0.0
  %v1231 = vmax.f32 %v1223, 0.0
  %v1232 = vmax.f32 %v1224, 0.0
  %v1233 = vmax.f32 %v1225, 0.0
  %v1234 = vmax.f32 %v1226, 0.0
  %v1235 = vld [vmem:[%s4] sm:$0xff]
  %v1236 = vld [vmem:[%s4 + $0x8] sm:$0xf]
  %vm1237 = vcmask 228352
  %v1239 = vsel %vm1237, %v1235, 0
  %v1242 = vsel %vm1237, %v1236, 0
  %vm1244 = vcmask 1043456
  %v1246 = vsel %vm1244, %v1233, 0
  %v1249 = vsel %vm1244, %v1234, 0
  %1251 = vmatprep.subr.mxu0 0.0
  %1252 = vmatpush1.msra.mxu0 0.0
  %1253 = vmatprep.subr.mxu0 0.0
  %1254 = vmatpush1.msra.mxu0 0.0
  %1255 = vmatprep.subr.mxu0 0.0
  %1256 = vmatpush1.msra.mxu0 0.0
  %1257 = vmatprep.subr.mxu0 0.0
  %1258 = vmatpush1.msra.mxu0 0.0
  %1259 = vmatprep.subr.mxu0 0.0
  %1260 = vmatpush1.msra.mxu0 0.0
  %1261 = vmatprep.subr.mxu0 0.0
  %1262 = vmatpush1.msra.mxu0 0.0
  %1263 = vmatprep.subr.mxu0 0.0
  %1264 = vmatpush1.msra.mxu0 0.0
  %1265 = vmatprep.subr.mxu0 0.0
  %1266 = vmatpush1.msra.mxu0 0.0
  %1267 = vmatprep.subr.mxu0 0.0
  %1268 = vmatpush1.msra.mxu0 0.0
  %1269 = vmatprep.subr.mxu0 0.0
  %1270 = vmatpush1.msra.mxu0 0.0
  %1271 = vmatprep.subr.mxu0 0.0
  %1272 = vmatpush1.msra.mxu0 0.0
  %1273 = vmatprep.subr.mxu0 0.0
  %1274 = vmatpush1.msra.mxu0 0.0
  %1275 = vmatprep.subr.mxu0 %v1249
  %1276 = vmatpush1.msra.mxu0 %v1246
  %1277 = vmatprep.subr.mxu0 %v1232
  %1278 = vmatpush1.msra.mxu0 %v1231
  %1279 = vmatprep.subr.mxu0 %v1230
  %1280 = vmatpush1.msra.mxu0 %v1229
  %1281 = vmatprep.subr.mxu0 %v1228
  %1282 = vmatpush1.msra.mxu0 %v1227
  %1283 = vmatprep.subr.mxu0 0.0
  %1284 = vmatpush2.msra.mxu0 0.0
  %1285 = vmatprep.subr.mxu0 0.0
  %1286 = vmatpush2.msra.mxu0 0.0
  %1287 = vmatprep.subr.mxu0 0.0
  %1288 = vmatpush2.msra.mxu0 0.0
  %1289 = vmatprep.subr.mxu0 0.0
  %1290 = vmatpush2.msra.mxu0 0.0
  %1291 = vmatprep.subr.mxu0 0.0
  %1292 = vmatpush2.msra.mxu0 0.0
  %1293 = vmatprep.subr.mxu0 0.0
  %1294 = vmatpush2.msra.mxu0 0.0
  %1295 = vmatprep.subr.mxu0 0.0
  %1296 = vmatpush2.msra.mxu0 0.0
  %1297 = vmatprep.subr.mxu0 0.0
  %1298 = vmatpush2.msra.mxu0 0.0
  %1299 = vmatprep.subr.mxu0 0.0
  %1300 = vmatpush2.msra.mxu0 0.0
  %1301 = vmatprep.subr.mxu0 0.0
  %1302 = vmatpush2.msra.mxu0 0.0
  %1303 = vmatprep.subr.mxu0 0.0
  %1304 = vmatpush2.msra.mxu0 0.0
  %1305 = vmatprep.subr.mxu0 0.0
  %1306 = vmatpush2.msra.mxu0 0.0
  %1307 = vmatprep.subr.mxu0 0.0
  %1308 = vmatpush2.msra.mxu0 0.0
  %1309 = vmatprep.subr.mxu0 0.0
  %1310 = vmatpush2.msra.mxu0 0.0
  %1311 = vmatprep.subr.mxu0 0.0
  %1312 = vmatpush2.msra.mxu0 0.0
  %1313 = vmatprep.subr.mxu0 0.0
  %1314 = vmatpush2.msra.mxu0 0.0
  %1315 = vmatprep.mubr.f32.mxu0 0.0
  %1316 = vmatmul.mubr.f32.gmra.mxu0 %v1239
  %v1317 = vpop.f32.mrf.mxu0
  %v1318 = vadd.f32 0.0, %v1317
  %v1319 = vpop.f32.mrf.mxu0
  %v1320 = vadd.f32 0.0, %v1319
  %1321 = vmatprep.mubr.f32.mxu0 0.0
  %1322 = vmatmul.mubr.f32.gmra.mxu0 %v1242
  %v1323 = vpop.f32.mrf.mxu0
  %v1324 = vadd.f32 0.0, %v1323
  %v1325 = vpop.f32.mrf.mxu0
  %v1326 = vadd.f32 0.0, %v1325
  %1327 = vdwg.mxu0
  %v1328 = vld [vmem:[%s5] sm:$0xff]
  %v1329 = vld [vmem:[%s5 + $0x8] sm:$0xff]
  %v1330 = vld [vmem:[%s5 + $0x10] sm:$0xff]
  %v1331 = vld [vmem:[%s5 + $0x18] sm:$0xff]
  %v1332 = vld [vmem:[%s5 + $0x20] sm:$0xff]
  %v1333 = vld [vmem:[%s5 + $0x28] sm:$0xff]
  %v1334 = vld [vmem:[%s5 + $0x30] sm:$0xff]
  %v1335 = vld [vmem:[%s5 + $0x38] sm:$0xff]
  %v1336 = vld [vmem:[%s5 + $0x40] sm:$0xff]
  %v1337 = vld [vmem:[%s5 + $0x48] sm:$0xff]
  %v1338 = vld [vmem:[%s5 + $0x50] sm:$0xff]
  %v1339 = vld [vmem:[%s5 + $0x58] sm:$0xff]
  %v1340 = vld [vmem:[%s5 + $0x60] sm:$0xff]
  %v1341 = vld [vmem:[%s5 + $0x68] sm:$0xff]
  %v1342 = vld [vmem:[%s5 + $0x70] sm:$0xff]
  %v1343 = vld [vmem:[%s5 + $0x78] sm:$0xff]
  %v1344 = vld [vmem:[%s5 + $0x80] sm:$0xff]
  %v1345 = vld [vmem:[%s5 + $0x88] sm:$0xff]
  %v1346 = vld [vmem:[%s5 + $0x90] sm:$0xff]
  %v1347 = vld [vmem:[%s5 + $0x98] sm:$0xff]
  %v1348 = vld [vmem:[%s5 + $0xa0] sm:$0xff]
  %v1349 = vld [vmem:[%s5 + $0xa8] sm:$0xff]
  %v1350 = vld [vmem:[%s5 + $0xb0] sm:$0xff]
  %v1351 = vld [vmem:[%s5 + $0xb8] sm:$0xff]
  %v1352 = vld [vmem:[%s5 + $0xc0] sm:$0xff]
  %v1353 = vld [vmem:[%s5 + $0xc8] sm:$0xff]
  %v1354 = vld [vmem:[%s5 + $0xd0] sm:$0xff]
  %v1355 = vld [vmem:[%s5 + $0xd8] sm:$0xff]
  %v1356 = vld [vmem:[%s5 + $0xe0] sm:$0xff]
  %v1357 = vld [vmem:[%s5 + $0xe8] sm:$0xff]
  %v1358 = vld [vmem:[%s5 + $0xf0] sm:$0xff]
  %v1359 = vld [vmem:[%s5 + $0xf8] sm:$0xff]
  %v1360 = vld [vmem:[%s5 + $0x100] sm:$0xff]
  %v1361 = vld [vmem:[%s5 + $0x108] sm:$0xff]
  %v1362 = vld [vmem:[%s5 + $0x110] sm:$0xff]
  %v1363 = vld [vmem:[%s5 + $0x118] sm:$0xff]
  %v1364 = vld [vmem:[%s5 + $0x120] sm:$0xff]
  %v1365 = vld [vmem:[%s5 + $0x128] sm:$0xff]
  %v1366 = vld [vmem:[%s5 + $0x130] sm:$0xff]
  %v1367 = vld [vmem:[%s5 + $0x138] sm:$0xff]
  %v1368 = vld [vmem:[%s5 + $0x140] sm:$0xff]
  %v1369 = vld [vmem:[%s5 + $0x148] sm:$0xff]
  %v1370 = vld [vmem:[%s5 + $0x150] sm:$0xff]
  %v1371 = vld [vmem:[%s5 + $0x158] sm:$0xff]
  %v1372 = vld [vmem:[%s5 + $0x160] sm:$0xff]
  %v1373 = vld [vmem:[%s5 + $0x168] sm:$0xff]
  %v1374 = vld [vmem:[%s5 + $0x170] sm:$0xff]
  %v1375 = vld [vmem:[%s5 + $0x178] sm:$0xff]
  %v1376 = vld [vmem:[%s5 + $0x180] sm:$0xff]
  %v1377 = vld [vmem:[%s5 + $0x188] sm:$0xff]
  %v1378 = vld [vmem:[%s5 + $0x190] sm:$0xff]
  %v1379 = vld [vmem:[%s5 + $0x198] sm:$0xff]
  %v1380 = vld [vmem:[%s5 + $0x1a0] sm:$0xff]
  %v1381 = vld [vmem:[%s5 + $0x1a8] sm:$0xff]
  %v1382 = vld [vmem:[%s5 + $0x1b0] sm:$0xff]
  %v1383 = vld [vmem:[%s5 + $0x1b8] sm:$0xff]
  %s1384 = scalar_lea.vmem %s4, 16
  %v1385 = vld [vmem:[%s1384] sm:$0xff]
  %v1386 = vld [vmem:[%s1384 + $0x8] sm:$0xf]
  %v1388 = vsel %vm1237, %v1385, 0
  %v1391 = vsel %vm1237, %v1386, 0
  %1393 = vmatprep.subr.mxu0 0.0
  %1394 = vmatpush1.msra.mxu0 0.0
  %1395 = vmatprep.subr.mxu0 0.0
  %1396 = vmatpush1.msra.mxu0 0.0
  %1397 = vmatprep.subr.mxu0 0.0
  %1398 = vmatpush1.msra.mxu0 0.0
  %1399 = vmatprep.subr.mxu0 0.0
  %1400 = vmatpush1.msra.mxu0 0.0
  %1401 = vmatprep.subr.mxu0 0.0
  %1402 = vmatpush1.msra.mxu0 0.0
  %1403 = vmatprep.subr.mxu0 0.0
  %1404 = vmatpush1.msra.mxu0 0.0
  %1405 = vmatprep.subr.mxu0 0.0
  %1406 = vmatpush1.msra.mxu0 0.0
  %1407 = vmatprep.subr.mxu0 0.0
  %1408 = vmatpush1.msra.mxu0 0.0
  %1409 = vmatprep.subr.mxu0 0.0
  %1410 = vmatpush1.msra.mxu0 0.0
  %1411 = vmatprep.subr.mxu0 0.0
  %1412 = vmatpush1.msra.mxu0 0.0
  %1413 = vmatprep.subr.mxu0 0.0
  %1414 = vmatpush1.msra.mxu0 0.0
  %1415 = vmatprep.subr.mxu0 0.0
  %1416 = vmatpush1.msra.mxu0 0.0
  %1417 = vmatprep.subr.mxu0 %v1249
  %1418 = vmatpush1.msra.mxu0 %v1246
  %1419 = vmatprep.subr.mxu0 %v1232
  %1420 = vmatpush1.msra.mxu0 %v1231
  %1421 = vmatprep.subr.mxu0 %v1230
  %1422 = vmatpush1.msra.mxu0 %v1229
  %1423 = vmatprep.subr.mxu0 %v1228
  %1424 = vmatpush1.msra.mxu0 %v1227
  %1425 = vmatprep.subr.mxu0 0.0
  %1426 = vmatpush2.msra.mxu0 0.0
  %1427 = vmatprep.subr.mxu0 0.0
  %1428 = vmatpush2.msra.mxu0 0.0
  %1429 = vmatprep.subr.mxu0 0.0
  %1430 = vmatpush2.msra.mxu0 0.0
  %1431 = vmatprep.subr.mxu0 0.0
  %1432 = vmatpush2.msra.mxu0 0.0
  %1433 = vmatprep.subr.mxu0 0.0
  %1434 = vmatpush2.msra.mxu0 0.0
  %1435 = vmatprep.subr.mxu0 0.0
  %1436 = vmatpush2.msra.mxu0 0.0
  %1437 = vmatprep.subr.mxu0 0.0
  %1438 = vmatpush2.msra.mxu0 0.0
  %1439 = vmatprep.subr.mxu0 0.0
  %1440 = vmatpush2.msra.mxu0 0.0
  %1441 = vmatprep.subr.mxu0 0.0
  %1442 = vmatpush2.msra.mxu0 0.0
  %1443 = vmatprep.subr.mxu0 0.0
  %1444 = vmatpush2.msra.mxu0 0.0
  %1445 = vmatprep.subr.mxu0 0.0
  %1446 = vmatpush2.msra.mxu0 0.0
  %1447 = vmatprep.subr.mxu0 0.0
  %1448 = vmatpush2.msra.mxu0 0.0
  %1449 = vmatprep.subr.mxu0 0.0
  %1450 = vmatpush2.msra.mxu0 0.0
  %1451 = vmatprep.subr.mxu0 0.0
  %1452 = vmatpush2.msra.mxu0 0.0
  %1453 = vmatprep.subr.mxu0 0.0
  %1454 = vmatpush2.msra.mxu0 0.0
  %1455 = vmatprep.subr.mxu0 0.0
  %1456 = vmatpush2.msra.mxu0 0.0
  %1457 = vmatprep.mubr.f32.mxu0 0.0
  %1458 = vmatmul.mubr.f32.gmra.mxu0 %v1388
  %v1459 = vpop.f32.mrf.mxu0
  %v1460 = vadd.f32 0.0, %v1459
  %v1461 = vpop.f32.mrf.mxu0
  %v1462 = vadd.f32 0.0, %v1461
  %1463 = vmatprep.mubr.f32.mxu0 0.0
  %1464 = vmatmul.mubr.f32.gmra.mxu0 %v1391
  %v1465 = vpop.f32.mrf.mxu0
  %v1466 = vadd.f32 0.0, %v1465
  %v1467 = vpop.f32.mrf.mxu0
  %v1468 = vadd.f32 0.0, %v1467
  %1469 = vdwg.mxu0
  %s1470 = scalar_lea.vmem %s5, 448
  %v1471 = vld [vmem:[%s1470] sm:$0xff]
  %v1472 = vld [vmem:[%s1470 + $0x8] sm:$0xff]
  %v1473 = vld [vmem:[%s1470 + $0x10] sm:$0xff]
  %v1474 = vld [vmem:[%s1470 + $0x18] sm:$0xff]
  %v1475 = vld [vmem:[%s1470 + $0x20] sm:$0xff]
  %v1476 = vld [vmem:[%s1470 + $0x28] sm:$0xff]
  %v1477 = vld [vmem:[%s1470 + $0x30] sm:$0xff]
  %v1478 = vld [vmem:[%s1470 + $0x38] sm:$0xff]
  %v1479 = vld [vmem:[%s1470 + $0x40] sm:$0xff]
  %v1480 = vld [vmem:[%s1470 + $0x48] sm:$0xff]
  %v1481 = vld [vmem:[%s1470 + $0x50] sm:$0xff]
  %v1482 = vld [vmem:[%s1470 + $0x58] sm:$0xff]
  %v1483 = vld [vmem:[%s1470 + $0x60] sm:$0xff]
  %v1484 = vld [vmem:[%s1470 + $0x68] sm:$0xff]
  %v1485 = vld [vmem:[%s1470 + $0x70] sm:$0xff]
  %v1486 = vld [vmem:[%s1470 + $0x78] sm:$0xff]
  %v1487 = vld [vmem:[%s1470 + $0x80] sm:$0xff]
  %v1488 = vld [vmem:[%s1470 + $0x88] sm:$0xff]
  %v1489 = vld [vmem:[%s1470 + $0x90] sm:$0xff]
  %v1490 = vld [vmem:[%s1470 + $0x98] sm:$0xff]
  %v1491 = vld [vmem:[%s1470 + $0xa0] sm:$0xff]
  %v1492 = vld [vmem:[%s1470 + $0xa8] sm:$0xff]
  %v1493 = vld [vmem:[%s1470 + $0xb0] sm:$0xff]
  %v1494 = vld [vmem:[%s1470 + $0xb8] sm:$0xff]
  %v1495 = vld [vmem:[%s1470 + $0xc0] sm:$0xff]
  %v1496 = vld [vmem:[%s1470 + $0xc8] sm:$0xff]
  %v1497 = vld [vmem:[%s1470 + $0xd0] sm:$0xff]
  %v1498 = vld [vmem:[%s1470 + $0xd8] sm:$0xff]
  %v1499 = vld [vmem:[%s1470 + $0xe0] sm:$0xff]
  %v1500 = vld [vmem:[%s1470 + $0xe8] sm:$0xff]
  %v1501 = vld [vmem:[%s1470 + $0xf0] sm:$0xff]
  %v1502 = vld [vmem:[%s1470 + $0xf8] sm:$0xff]
  %v1503 = vld [vmem:[%s1470 + $0x100] sm:$0xff]
  %v1504 = vld [vmem:[%s1470 + $0x108] sm:$0xff]
  %v1505 = vld [vmem:[%s1470 + $0x110] sm:$0xff]
  %v1506 = vld [vmem:[%s1470 + $0x118] sm:$0xff]
  %v1507 = vld [vmem:[%s1470 + $0x120] sm:$0xff]
  %v1508 = vld [vmem:[%s1470 + $0x128] sm:$0xff]
  %v1509 = vld [vmem:[%s1470 + $0x130] sm:$0xff]
  %v1510 = vld [vmem:[%s1470 + $0x138] sm:$0xff]
  %v1511 = vld [vmem:[%s1470 + $0x140] sm:$0xff]
  %v1512 = vld [vmem:[%s1470 + $0x148] sm:$0xff]
  %v1513 = vld [vmem:[%s1470 + $0x150] sm:$0xff]
  %v1514 = vld [vmem:[%s1470 + $0x158] sm:$0xff]
  %v1515 = vld [vmem:[%s1470 + $0x160] sm:$0xff]
  %v1516 = vld [vmem:[%s1470 + $0x168] sm:$0xff]
  %v1517 = vld [vmem:[%s1470 + $0x170] sm:$0xff]
  %v1518 = vld [vmem:[%s1470 + $0x178] sm:$0xff]
  %v1519 = vld [vmem:[%s1470 + $0x180] sm:$0xff]
  %v1520 = vld [vmem:[%s1470 + $0x188] sm:$0xff]
  %v1521 = vld [vmem:[%s1470 + $0x190] sm:$0xff]
  %v1522 = vld [vmem:[%s1470 + $0x198] sm:$0xff]
  %v1523 = vld [vmem:[%s1470 + $0x1a0] sm:$0xff]
  %v1524 = vld [vmem:[%s1470 + $0x1a8] sm:$0xff]
  %v1525 = vld [vmem:[%s1470 + $0x1b0] sm:$0xff]
  %v1526 = vld [vmem:[%s1470 + $0x1b8] sm:$0xff]
  %v1528 = vsel %vm296, %v1462, 0
  %v1531 = vsel %vm296, %v1468, 0
  %1533 = vmatprep.subr.mxu0 %v1502
  %1534 = vmatpush1.msra.mxu0 %v1501
  %1535 = vmatprep.subr.mxu0 %v1500
  %1536 = vmatpush1.msra.mxu0 %v1499
  %1537 = vmatprep.subr.mxu0 %v1498
  %1538 = vmatpush1.msra.mxu0 %v1497
  %1539 = vmatprep.subr.mxu0 %v1496
  %1540 = vmatpush1.msra.mxu0 %v1495
  %1541 = vmatprep.subr.mxu0 %v1494
  %1542 = vmatpush1.msra.mxu0 %v1493
  %1543 = vmatprep.subr.mxu0 %v1492
  %1544 = vmatpush1.msra.mxu0 %v1491
  %1545 = vmatprep.subr.mxu0 %v1490
  %1546 = vmatpush1.msra.mxu0 %v1489
  %1547 = vmatprep.subr.mxu0 %v1488
  %1548 = vmatpush1.msra.mxu0 %v1487
  %1549 = vmatprep.subr.mxu0 %v1486
  %1550 = vmatpush1.msra.mxu0 %v1485
  %1551 = vmatprep.subr.mxu0 %v1484
  %1552 = vmatpush1.msra.mxu0 %v1483
  %1553 = vmatprep.subr.mxu0 %v1482
  %1554 = vmatpush1.msra.mxu0 %v1481
  %1555 = vmatprep.subr.mxu0 %v1480
  %1556 = vmatpush1.msra.mxu0 %v1479
  %1557 = vmatprep.subr.mxu0 %v1478
  %1558 = vmatpush1.msra.mxu0 %v1477
  %1559 = vmatprep.subr.mxu0 %v1476
  %1560 = vmatpush1.msra.mxu0 %v1475
  %1561 = vmatprep.subr.mxu0 %v1474
  %1562 = vmatpush1.msra.mxu0 %v1473
  %1563 = vmatprep.subr.mxu0 %v1472
  %1564 = vmatpush1.msra.mxu0 %v1471
  %1565 = vmatprep.subr.mxu0 0.0
  %1566 = vmatpush2.msra.mxu0 0.0
  %1567 = vmatprep.subr.mxu0 0.0
  %1568 = vmatpush2.msra.mxu0 0.0
  %1569 = vmatprep.subr.mxu0 0.0
  %1570 = vmatpush2.msra.mxu0 0.0
  %1571 = vmatprep.subr.mxu0 0.0
  %1572 = vmatpush2.msra.mxu0 0.0
  %1573 = vmatprep.subr.mxu0 %v1526
  %1574 = vmatpush2.msra.mxu0 %v1525
  %1575 = vmatprep.subr.mxu0 %v1524
  %1576 = vmatpush2.msra.mxu0 %v1523
  %1577 = vmatprep.subr.mxu0 %v1522
  %1578 = vmatpush2.msra.mxu0 %v1521
  %1579 = vmatprep.subr.mxu0 %v1520
  %1580 = vmatpush2.msra.mxu0 %v1519
  %1581 = vmatprep.subr.mxu0 %v1518
  %1582 = vmatpush2.msra.mxu0 %v1517
  %1583 = vmatprep.subr.mxu0 %v1516
  %1584 = vmatpush2.msra.mxu0 %v1515
  %1585 = vmatprep.subr.mxu0 %v1514
  %1586 = vmatpush2.msra.mxu0 %v1513
  %1587 = vmatprep.subr.mxu0 %v1512
  %1588 = vmatpush2.msra.mxu0 %v1511
  %1589 = vmatprep.subr.mxu0 %v1510
  %1590 = vmatpush2.msra.mxu0 %v1509
  %1591 = vmatprep.subr.mxu0 %v1508
  %1592 = vmatpush2.msra.mxu0 %v1507
  %1593 = vmatprep.subr.mxu0 %v1506
  %1594 = vmatpush2.msra.mxu0 %v1505
  %1595 = vmatprep.subr.mxu0 %v1504
  %1596 = vmatpush2.msra.mxu0 %v1503
  %1597 = vmatprep.mubr.f32.mxu0 %v1528
  %1598 = vmatmul.mubr.f32.gmra.mxu0 %v1460
  %v1599 = vpop.f32.mrf.mxu0
  %v1600 = vadd.f32 0.0, %v1599
  %v1601 = vpop.f32.mrf.mxu0
  %v1602 = vadd.f32 0.0, %v1601
  %1603 = vmatprep.mubr.f32.mxu0 %v1531
  %1604 = vmatmul.mubr.f32.gmra.mxu0 %v1466
  %v1605 = vpop.f32.mrf.mxu0
  %v1606 = vadd.f32 0.0, %v1605
  %v1607 = vpop.f32.mrf.mxu0
  %v1608 = vadd.f32 0.0, %v1607
  %1609 = vdwg.mxu0
  %v1611 = vsel %vm296, %v1320, 0
  %v1614 = vsel %vm296, %v1326, 0
  %1616 = vmatprep.subr.mxu0 %v1359
  %1617 = vmatpush1.msra.mxu0 %v1358
  %1618 = vmatprep.subr.mxu0 %v1357
  %1619 = vmatpush1.msra.mxu0 %v1356
  %1620 = vmatprep.subr.mxu0 %v1355
  %1621 = vmatpush1.msra.mxu0 %v1354
  %1622 = vmatprep.subr.mxu0 %v1353
  %1623 = vmatpush1.msra.mxu0 %v1352
  %1624 = vmatprep.subr.mxu0 %v1351
  %1625 = vmatpush1.msra.mxu0 %v1350
  %1626 = vmatprep.subr.mxu0 %v1349
  %1627 = vmatpush1.msra.mxu0 %v1348
  %1628 = vmatprep.subr.mxu0 %v1347
  %1629 = vmatpush1.msra.mxu0 %v1346
  %1630 = vmatprep.subr.mxu0 %v1345
  %1631 = vmatpush1.msra.mxu0 %v1344
  %1632 = vmatprep.subr.mxu0 %v1343
  %1633 = vmatpush1.msra.mxu0 %v1342
  %1634 = vmatprep.subr.mxu0 %v1341
  %1635 = vmatpush1.msra.mxu0 %v1340
  %1636 = vmatprep.subr.mxu0 %v1339
  %1637 = vmatpush1.msra.mxu0 %v1338
  %1638 = vmatprep.subr.mxu0 %v1337
  %1639 = vmatpush1.msra.mxu0 %v1336
  %1640 = vmatprep.subr.mxu0 %v1335
  %1641 = vmatpush1.msra.mxu0 %v1334
  %1642 = vmatprep.subr.mxu0 %v1333
  %1643 = vmatpush1.msra.mxu0 %v1332
  %1644 = vmatprep.subr.mxu0 %v1331
  %1645 = vmatpush1.msra.mxu0 %v1330
  %1646 = vmatprep.subr.mxu0 %v1329
  %1647 = vmatpush1.msra.mxu0 %v1328
  %1648 = vmatprep.subr.mxu0 0.0
  %1649 = vmatpush2.msra.mxu0 0.0
  %1650 = vmatprep.subr.mxu0 0.0
  %1651 = vmatpush2.msra.mxu0 0.0
  %1652 = vmatprep.subr.mxu0 0.0
  %1653 = vmatpush2.msra.mxu0 0.0
  %1654 = vmatprep.subr.mxu0 0.0
  %1655 = vmatpush2.msra.mxu0 0.0
  %1656 = vmatprep.subr.mxu0 %v1383
  %1657 = vmatpush2.msra.mxu0 %v1382
  %1658 = vmatprep.subr.mxu0 %v1381
  %1659 = vmatpush2.msra.mxu0 %v1380
  %1660 = vmatprep.subr.mxu0 %v1379
  %1661 = vmatpush2.msra.mxu0 %v1378
  %1662 = vmatprep.subr.mxu0 %v1377
  %1663 = vmatpush2.msra.mxu0 %v1376
  %1664 = vmatprep.subr.mxu0 %v1375
  %1665 = vmatpush2.msra.mxu0 %v1374
  %1666 = vmatprep.subr.mxu0 %v1373
  %1667 = vmatpush2.msra.mxu0 %v1372
  %1668 = vmatprep.subr.mxu0 %v1371
  %1669 = vmatpush2.msra.mxu0 %v1370
  %1670 = vmatprep.subr.mxu0 %v1369
  %1671 = vmatpush2.msra.mxu0 %v1368
  %1672 = vmatprep.subr.mxu0 %v1367
  %1673 = vmatpush2.msra.mxu0 %v1366
  %1674 = vmatprep.subr.mxu0 %v1365
  %1675 = vmatpush2.msra.mxu0 %v1364
  %1676 = vmatprep.subr.mxu0 %v1363
  %1677 = vmatpush2.msra.mxu0 %v1362
  %1678 = vmatprep.subr.mxu0 %v1361
  %1679 = vmatpush2.msra.mxu0 %v1360
  %1680 = vmatprep.mubr.f32.mxu0 %v1611
  %1681 = vmatmul.mubr.f32.gmra.mxu0 %v1318
  %v1682 = vpop.f32.mrf.mxu0
  %v1683 = vadd.f32 %v1600, %v1682
  %v1684 = vpop.f32.mrf.mxu0
  %v1685 = vadd.f32 %v1602, %v1684
  %1686 = vmatprep.mubr.f32.mxu0 %v1614
  %1687 = vmatmul.mubr.f32.gmra.mxu0 %v1324
  %v1688 = vpop.f32.mrf.mxu0
  %v1689 = vadd.f32 %v1606, %v1688
  %v1690 = vpop.f32.mrf.mxu0
  %v1691 = vadd.f32 %v1608, %v1690
  %1692 = vdwg.mxu0
  %s1693 = scalar_lea.vmem %s4, 32
  %v1694 = vld [vmem:[%s1693] sm:$0xff]
  %v1695 = vld [vmem:[%s1693 + $0x8] sm:$0xf]
  %v1697 = vsel %vm1237, %v1694, 0
  %v1700 = vsel %vm1237, %v1695, 0
  %1702 = vmatprep.subr.mxu0 0.0
  %1703 = vmatpush1.msra.mxu0 0.0
  %1704 = vmatprep.subr.mxu0 0.0
  %1705 = vmatpush1.msra.mxu0 0.0
  %1706 = vmatprep.subr.mxu0 0.0
  %1707 = vmatpush1.msra.mxu0 0.0
  %1708 = vmatprep.subr.mxu0 0.0
  %1709 = vmatpush1.msra.mxu0 0.0
  %1710 = vmatprep.subr.mxu0 0.0
  %1711 = vmatpush1.msra.mxu0 0.0
  %1712 = vmatprep.subr.mxu0 0.0
  %1713 = vmatpush1.msra.mxu0 0.0
  %1714 = vmatprep.subr.mxu0 0.0
  %1715 = vmatpush1.msra.mxu0 0.0
  %1716 = vmatprep.subr.mxu0 0.0
  %1717 = vmatpush1.msra.mxu0 0.0
  %1718 = vmatprep.subr.mxu0 0.0
  %1719 = vmatpush1.msra.mxu0 0.0
  %1720 = vmatprep.subr.mxu0 0.0
  %1721 = vmatpush1.msra.mxu0 0.0
  %1722 = vmatprep.subr.mxu0 0.0
  %1723 = vmatpush1.msra.mxu0 0.0
  %1724 = vmatprep.subr.mxu0 0.0
  %1725 = vmatpush1.msra.mxu0 0.0
  %1726 = vmatprep.subr.mxu0 %v1249
  %1727 = vmatpush1.msra.mxu0 %v1246
  %1728 = vmatprep.subr.mxu0 %v1232
  %1729 = vmatpush1.msra.mxu0 %v1231
  %1730 = vmatprep.subr.mxu0 %v1230
  %1731 = vmatpush1.msra.mxu0 %v1229
  %1732 = vmatprep.subr.mxu0 %v1228
  %1733 = vmatpush1.msra.mxu0 %v1227
  %1734 = vmatprep.subr.mxu0 0.0
  %1735 = vmatpush2.msra.mxu0 0.0
  %1736 = vmatprep.subr.mxu0 0.0
  %1737 = vmatpush2.msra.mxu0 0.0
  %1738 = vmatprep.subr.mxu0 0.0
  %1739 = vmatpush2.msra.mxu0 0.0
  %1740 = vmatprep.subr.mxu0 0.0
  %1741 = vmatpush2.msra.mxu0 0.0
  %1742 = vmatprep.subr.mxu0 0.0
  %1743 = vmatpush2.msra.mxu0 0.0
  %1744 = vmatprep.subr.mxu0 0.0
  %1745 = vmatpush2.msra.mxu0 0.0
  %1746 = vmatprep.subr.mxu0 0.0
  %1747 = vmatpush2.msra.mxu0 0.0
  %1748 = vmatprep.subr.mxu0 0.0
  %1749 = vmatpush2.msra.mxu0 0.0
  %1750 = vmatprep.subr.mxu0 0.0
  %1751 = vmatpush2.msra.mxu0 0.0
  %1752 = vmatprep.subr.mxu0 0.0
  %1753 = vmatpush2.msra.mxu0 0.0
  %1754 = vmatprep.subr.mxu0 0.0
  %1755 = vmatpush2.msra.mxu0 0.0
  %1756 = vmatprep.subr.mxu0 0.0
  %1757 = vmatpush2.msra.mxu0 0.0
  %1758 = vmatprep.subr.mxu0 0.0
  %1759 = vmatpush2.msra.mxu0 0.0
  %1760 = vmatprep.subr.mxu0 0.0
  %1761 = vmatpush2.msra.mxu0 0.0
  %1762 = vmatprep.subr.mxu0 0.0
  %1763 = vmatpush2.msra.mxu0 0.0
  %1764 = vmatprep.subr.mxu0 0.0
  %1765 = vmatpush2.msra.mxu0 0.0
  %1766 = vmatprep.mubr.f32.mxu0 0.0
  %1767 = vmatmul.mubr.f32.gmra.mxu0 %v1697
  %v1768 = vpop.f32.mrf.mxu0
  %v1769 = vadd.f32 0.0, %v1768
  %v1770 = vpop.f32.mrf.mxu0
  %v1771 = vadd.f32 0.0, %v1770
  %1772 = vmatprep.mubr.f32.mxu0 0.0
  %1773 = vmatmul.mubr.f32.gmra.mxu0 %v1700
  %v1774 = vpop.f32.mrf.mxu0
  %v1775 = vadd.f32 0.0, %v1774
  %v1776 = vpop.f32.mrf.mxu0
  %v1777 = vadd.f32 0.0, %v1776
  %1778 = vdwg.mxu0
  %s1779 = scalar_lea.vmem %s5, 896
  %v1780 = vld [vmem:[%s1779] sm:$0xff]
  %v1781 = vld [vmem:[%s1779 + $0x8] sm:$0xff]
  %v1782 = vld [vmem:[%s1779 + $0x10] sm:$0xff]
  %v1783 = vld [vmem:[%s1779 + $0x18] sm:$0xff]
  %v1784 = vld [vmem:[%s1779 + $0x20] sm:$0xff]
  %v1785 = vld [vmem:[%s1779 + $0x28] sm:$0xff]
  %v1786 = vld [vmem:[%s1779 + $0x30] sm:$0xff]
  %v1787 = vld [vmem:[%s1779 + $0x38] sm:$0xff]
  %v1788 = vld [vmem:[%s1779 + $0x40] sm:$0xff]
  %v1789 = vld [vmem:[%s1779 + $0x48] sm:$0xff]
  %v1790 = vld [vmem:[%s1779 + $0x50] sm:$0xff]
  %v1791 = vld [vmem:[%s1779 + $0x58] sm:$0xff]
  %v1792 = vld [vmem:[%s1779 + $0x60] sm:$0xff]
  %v1793 = vld [vmem:[%s1779 + $0x68] sm:$0xff]
  %v1794 = vld [vmem:[%s1779 + $0x70] sm:$0xff]
  %v1795 = vld [vmem:[%s1779 + $0x78] sm:$0xff]
  %v1796 = vld [vmem:[%s1779 + $0x80] sm:$0xff]
  %v1797 = vld [vmem:[%s1779 + $0x88] sm:$0xff]
  %v1798 = vld [vmem:[%s1779 + $0x90] sm:$0xff]
  %v1799 = vld [vmem:[%s1779 + $0x98] sm:$0xff]
  %v1800 = vld [vmem:[%s1779 + $0xa0] sm:$0xff]
  %v1801 = vld [vmem:[%s1779 + $0xa8] sm:$0xff]
  %v1802 = vld [vmem:[%s1779 + $0xb0] sm:$0xff]
  %v1803 = vld [vmem:[%s1779 + $0xb8] sm:$0xff]
  %v1804 = vld [vmem:[%s1779 + $0xc0] sm:$0xff]
  %v1805 = vld [vmem:[%s1779 + $0xc8] sm:$0xff]
  %v1806 = vld [vmem:[%s1779 + $0xd0] sm:$0xff]
  %v1807 = vld [vmem:[%s1779 + $0xd8] sm:$0xff]
  %v1808 = vld [vmem:[%s1779 + $0xe0] sm:$0xff]
  %v1809 = vld [vmem:[%s1779 + $0xe8] sm:$0xff]
  %v1810 = vld [vmem:[%s1779 + $0xf0] sm:$0xff]
  %v1811 = vld [vmem:[%s1779 + $0xf8] sm:$0xff]
  %v1812 = vld [vmem:[%s1779 + $0x100] sm:$0xff]
  %v1813 = vld [vmem:[%s1779 + $0x108] sm:$0xff]
  %v1814 = vld [vmem:[%s1779 + $0x110] sm:$0xff]
  %v1815 = vld [vmem:[%s1779 + $0x118] sm:$0xff]
  %v1816 = vld [vmem:[%s1779 + $0x120] sm:$0xff]
  %v1817 = vld [vmem:[%s1779 + $0x128] sm:$0xff]
  %v1818 = vld [vmem:[%s1779 + $0x130] sm:$0xff]
  %v1819 = vld [vmem:[%s1779 + $0x138] sm:$0xff]
  %v1820 = vld [vmem:[%s1779 + $0x140] sm:$0xff]
  %v1821 = vld [vmem:[%s1779 + $0x148] sm:$0xff]
  %v1822 = vld [vmem:[%s1779 + $0x150] sm:$0xff]
  %v1823 = vld [vmem:[%s1779 + $0x158] sm:$0xff]
  %v1824 = vld [vmem:[%s1779 + $0x160] sm:$0xff]
  %v1825 = vld [vmem:[%s1779 + $0x168] sm:$0xff]
  %v1826 = vld [vmem:[%s1779 + $0x170] sm:$0xff]
  %v1827 = vld [vmem:[%s1779 + $0x178] sm:$0xff]
  %v1828 = vld [vmem:[%s1779 + $0x180] sm:$0xff]
  %v1829 = vld [vmem:[%s1779 + $0x188] sm:$0xff]
  %v1830 = vld [vmem:[%s1779 + $0x190] sm:$0xff]
  %v1831 = vld [vmem:[%s1779 + $0x198] sm:$0xff]
  %v1832 = vld [vmem:[%s1779 + $0x1a0] sm:$0xff]
  %v1833 = vld [vmem:[%s1779 + $0x1a8] sm:$0xff]
  %v1834 = vld [vmem:[%s1779 + $0x1b0] sm:$0xff]
  %v1835 = vld [vmem:[%s1779 + $0x1b8] sm:$0xff]
  %v1837 = vsel %vm296, %v1771, 0
  %v1840 = vsel %vm296, %v1777, 0
  %1842 = vmatprep.subr.mxu0 %v1811
  %1843 = vmatpush1.msra.mxu0 %v1810
  %1844 = vmatprep.subr.mxu0 %v1809
  %1845 = vmatpush1.msra.mxu0 %v1808
  %1846 = vmatprep.subr.mxu0 %v1807
  %1847 = vmatpush1.msra.mxu0 %v1806
  %1848 = vmatprep.subr.mxu0 %v1805
  %1849 = vmatpush1.msra.mxu0 %v1804
  %1850 = vmatprep.subr.mxu0 %v1803
  %1851 = vmatpush1.msra.mxu0 %v1802
  %1852 = vmatprep.subr.mxu0 %v1801
  %1853 = vmatpush1.msra.mxu0 %v1800
  %1854 = vmatprep.subr.mxu0 %v1799
  %1855 = vmatpush1.msra.mxu0 %v1798
  %1856 = vmatprep.subr.mxu0 %v1797
  %1857 = vmatpush1.msra.mxu0 %v1796
  %1858 = vmatprep.subr.mxu0 %v1795
  %1859 = vmatpush1.msra.mxu0 %v1794
  %1860 = vmatprep.subr.mxu0 %v1793
  %1861 = vmatpush1.msra.mxu0 %v1792
  %1862 = vmatprep.subr.mxu0 %v1791
  %1863 = vmatpush1.msra.mxu0 %v1790
  %1864 = vmatprep.subr.mxu0 %v1789
  %1865 = vmatpush1.msra.mxu0 %v1788
  %1866 = vmatprep.subr.mxu0 %v1787
  %1867 = vmatpush1.msra.mxu0 %v1786
  %1868 = vmatprep.subr.mxu0 %v1785
  %1869 = vmatpush1.msra.mxu0 %v1784
  %1870 = vmatprep.subr.mxu0 %v1783
  %1871 = vmatpush1.msra.mxu0 %v1782
  %1872 = vmatprep.subr.mxu0 %v1781
  %1873 = vmatpush1.msra.mxu0 %v1780
  %1874 = vmatprep.subr.mxu0 0.0
  %1875 = vmatpush2.msra.mxu0 0.0
  %1876 = vmatprep.subr.mxu0 0.0
  %1877 = vmatpush2.msra.mxu0 0.0
  %1878 = vmatprep.subr.mxu0 0.0
  %1879 = vmatpush2.msra.mxu0 0.0
  %1880 = vmatprep.subr.mxu0 0.0
  %1881 = vmatpush2.msra.mxu0 0.0
  %1882 = vmatprep.subr.mxu0 %v1835
  %1883 = vmatpush2.msra.mxu0 %v1834
  %1884 = vmatprep.subr.mxu0 %v1833
  %1885 = vmatpush2.msra.mxu0 %v1832
  %1886 = vmatprep.subr.mxu0 %v1831
  %1887 = vmatpush2.msra.mxu0 %v1830
  %1888 = vmatprep.subr.mxu0 %v1829
  %1889 = vmatpush2.msra.mxu0 %v1828
  %1890 = vmatprep.subr.mxu0 %v1827
  %1891 = vmatpush2.msra.mxu0 %v1826
  %1892 = vmatprep.subr.mxu0 %v1825
  %1893 = vmatpush2.msra.mxu0 %v1824
  %1894 = vmatprep.subr.mxu0 %v1823
  %1895 = vmatpush2.msra.mxu0 %v1822
  %1896 = vmatprep.subr.mxu0 %v1821
  %1897 = vmatpush2.msra.mxu0 %v1820
  %1898 = vmatprep.subr.mxu0 %v1819
  %1899 = vmatpush2.msra.mxu0 %v1818
  %1900 = vmatprep.subr.mxu0 %v1817
  %1901 = vmatpush2.msra.mxu0 %v1816
  %1902 = vmatprep.subr.mxu0 %v1815
  %1903 = vmatpush2.msra.mxu0 %v1814
  %1904 = vmatprep.subr.mxu0 %v1813
  %1905 = vmatpush2.msra.mxu0 %v1812
  %1906 = vmatprep.mubr.f32.mxu0 %v1837
  %1907 = vmatmul.mubr.f32.gmra.mxu0 %v1769
  %v1908 = vpop.f32.mrf.mxu0
  %v1909 = vadd.f32 0.0, %v1908
  %v1910 = vpop.f32.mrf.mxu0
  %v1911 = vadd.f32 0.0, %v1910
  %1912 = vmatprep.mubr.f32.mxu0 %v1840
  %1913 = vmatmul.mubr.f32.gmra.mxu0 %v1775
  %v1914 = vpop.f32.mrf.mxu0
  %v1915 = vadd.f32 0.0, %v1914
  %v1916 = vpop.f32.mrf.mxu0
  %v1917 = vadd.f32 0.0, %v1916
  %1918 = vdwg.mxu0
  %v1919 = vadd.f32 %v1683, %v1909
  %v1920 = vadd.f32 %v1685, %v1911
  %v1921 = vadd.f32 %v1689, %v1915
  %v1922 = vadd.f32 %v1691, %v1917
  %v1923 = vld [vmem:[%s6] sm:$0x3]
  %v1925 = vlaneseq
  %v1926 = vshrl.u32 %v1925, 7
  %v1927 = vsub.s32 0, %v1926
  %v1928 = vrot.slane %v1923, %v1927
  %v1929 = vlaneseq
  %v1930 = vshrl.u32 %v1929, 7
  %v1931 = vsub.s32 1, %v1930
  %v1932 = vrot.slane %v1923, %v1931
  %v1935 = vadd.f32 %v1919, %v1928
  %v1936 = vadd.f32 %v1920, %v1932
  %v1937 = vadd.f32 %v1921, %v1928
  %v1938 = vadd.f32 %v1922, %v1932
  %v1939 = vmax.f32 %v1935, 0.0
  %v1940 = vmax.f32 %v1936, 0.0
  %v1941 = vmax.f32 %v1937, 0.0
  %v1942 = vmax.f32 %v1938, 0.0
  %v1943 = vld [vmem:[%s7] sm:$0xff]
  %vm1944 = vcmask 97280
  %v1946 = vsel %vm1944, %v1943, 0
  %v1949 = vsel %vm1244, %v1941, 0
  %v1952 = vsel %vm1244, %v1942, 0
  %1954 = vmatprep.subr.mxu0 0.0
  %1955 = vmatpush1.msra.mxu0 0.0
  %1956 = vmatprep.subr.mxu0 0.0
  %1957 = vmatpush1.msra.mxu0 0.0
  %1958 = vmatprep.subr.mxu0 0.0
  %1959 = vmatpush1.msra.mxu0 0.0
  %1960 = vmatprep.subr.mxu0 0.0
  %1961 = vmatpush1.msra.mxu0 0.0
  %1962 = vmatprep.subr.mxu0 0.0
  %1963 = vmatpush1.msra.mxu0 0.0
  %1964 = vmatprep.subr.mxu0 0.0
  %1965 = vmatpush1.msra.mxu0 0.0
  %1966 = vmatprep.subr.mxu0 0.0
  %1967 = vmatpush1.msra.mxu0 0.0
  %1968 = vmatprep.subr.mxu0 0.0
  %1969 = vmatpush1.msra.mxu0 0.0
  %1970 = vmatprep.subr.mxu0 0.0
  %1971 = vmatpush1.msra.mxu0 0.0
  %1972 = vmatprep.subr.mxu0 0.0
  %1973 = vmatpush1.msra.mxu0 0.0
  %1974 = vmatprep.subr.mxu0 0.0
  %1975 = vmatpush1.msra.mxu0 0.0
  %1976 = vmatprep.subr.mxu0 0.0
  %1977 = vmatpush1.msra.mxu0 0.0
  %1978 = vmatprep.subr.mxu0 0.0
  %1979 = vmatpush1.msra.mxu0 0.0
  %1980 = vmatprep.subr.mxu0 0.0
  %1981 = vmatpush1.msra.mxu0 0.0
  %1982 = vmatprep.subr.mxu0 %v1952
  %1983 = vmatpush1.msra.mxu0 %v1949
  %1984 = vmatprep.subr.mxu0 %v1940
  %1985 = vmatpush1.msra.mxu0 %v1939
  %1986 = vmatprep.subr.mxu0 0.0
  %1987 = vmatpush2.msra.mxu0 0.0
  %1988 = vmatprep.subr.mxu0 0.0
  %1989 = vmatpush2.msra.mxu0 0.0
  %1990 = vmatprep.subr.mxu0 0.0
  %1991 = vmatpush2.msra.mxu0 0.0
  %1992 = vmatprep.subr.mxu0 0.0
  %1993 = vmatpush2.msra.mxu0 0.0
  %1994 = vmatprep.subr.mxu0 0.0
  %1995 = vmatpush2.msra.mxu0 0.0
  %1996 = vmatprep.subr.mxu0 0.0
  %1997 = vmatpush2.msra.mxu0 0.0
  %1998 = vmatprep.subr.mxu0 0.0
  %1999 = vmatpush2.msra.mxu0 0.0
  %2000 = vmatprep.subr.mxu0 0.0
  %2001 = vmatpush2.msra.mxu0 0.0
  %2002 = vmatprep.subr.mxu0 0.0
  %2003 = vmatpush2.msra.mxu0 0.0
  %2004 = vmatprep.subr.mxu0 0.0
  %2005 = vmatpush2.msra.mxu0 0.0
  %2006 = vmatprep.subr.mxu0 0.0
  %2007 = vmatpush2.msra.mxu0 0.0
  %2008 = vmatprep.subr.mxu0 0.0
  %2009 = vmatpush2.msra.mxu0 0.0
  %2010 = vmatprep.subr.mxu0 0.0
  %2011 = vmatpush2.msra.mxu0 0.0
  %2012 = vmatprep.subr.mxu0 0.0
  %2013 = vmatpush2.msra.mxu0 0.0
  %2014 = vmatprep.subr.mxu0 0.0
  %2015 = vmatpush2.msra.mxu0 0.0
  %2016 = vmatprep.subr.mxu0 0.0
  %2017 = vmatpush2.msra.mxu0 0.0
  %2018 = vmatprep.mubr.f32.mxu0 0.0
  %2019 = vmatmul.mubr.f32.gmra.mxu0 %v1946
  %v2020 = vpop.f32.mrf.mxu0
  %v2021 = vadd.f32 0.0, %v2020
  %v2022 = vpop.f32.mrf.mxu0
  %v2023 = vadd.f32 0.0, %v2022
  %2024 = vdwg.mxu0
  %v2025 = vld [vmem:[%s8] sm:$0xff]
  %v2026 = vld [vmem:[%s8 + $0x8] sm:$0xff]
  %v2027 = vld [vmem:[%s8 + $0x10] sm:$0xff]
  %v2028 = vld [vmem:[%s8 + $0x18] sm:$0xff]
  %v2029 = vld [vmem:[%s8 + $0x20] sm:$0xff]
  %v2030 = vld [vmem:[%s8 + $0x28] sm:$0xff]
  %v2031 = vld [vmem:[%s8 + $0x30] sm:$0xff]
  %v2032 = vld [vmem:[%s8 + $0x38] sm:$0xff]
  %v2033 = vld [vmem:[%s8 + $0x40] sm:$0xff]
  %v2034 = vld [vmem:[%s8 + $0x48] sm:$0xff]
  %v2035 = vld [vmem:[%s8 + $0x50] sm:$0xff]
  %v2036 = vld [vmem:[%s8 + $0x58] sm:$0xff]
  %v2037 = vld [vmem:[%s8 + $0x60] sm:$0xff]
  %v2038 = vld [vmem:[%s8 + $0x68] sm:$0xff]
  %v2039 = vld [vmem:[%s8 + $0x70] sm:$0xff]
  %v2040 = vld [vmem:[%s8 + $0x78] sm:$0xff]
  %v2041 = vld [vmem:[%s8 + $0x80] sm:$0xff]
  %v2042 = vld [vmem:[%s8 + $0x88] sm:$0xff]
  %v2043 = vld [vmem:[%s8 + $0x90] sm:$0xff]
  %v2044 = vld [vmem:[%s8 + $0x98] sm:$0xff]
  %v2045 = vld [vmem:[%s8 + $0xa0] sm:$0xff]
  %v2046 = vld [vmem:[%s8 + $0xa8] sm:$0xff]
  %v2047 = vld [vmem:[%s8 + $0xb0] sm:$0xff]
  %v2048 = vld [vmem:[%s8 + $0xb8] sm:$0xff]
  %s2049 = scalar_lea.vmem %s7, 8
  %v2050 = vld [vmem:[%s2049] sm:$0xff]
  %v2052 = vsel %vm1944, %v2050, 0
  %2054 = vmatprep.subr.mxu0 0.0
  %2055 = vmatpush1.msra.mxu0 0.0
  %2056 = vmatprep.subr.mxu0 0.0
  %2057 = vmatpush1.msra.mxu0 0.0
  %2058 = vmatprep.subr.mxu0 0.0
  %2059 = vmatpush1.msra.mxu0 0.0
  %2060 = vmatprep.subr.mxu0 0.0
  %2061 = vmatpush1.msra.mxu0 0.0
  %2062 = vmatprep.subr.mxu0 0.0
  %2063 = vmatpush1.msra.mxu0 0.0
  %2064 = vmatprep.subr.mxu0 0.0
  %2065 = vmatpush1.msra.mxu0 0.0
  %2066 = vmatprep.subr.mxu0 0.0
  %2067 = vmatpush1.msra.mxu0 0.0
  %2068 = vmatprep.subr.mxu0 0.0
  %2069 = vmatpush1.msra.mxu0 0.0
  %2070 = vmatprep.subr.mxu0 0.0
  %2071 = vmatpush1.msra.mxu0 0.0
  %2072 = vmatprep.subr.mxu0 0.0
  %2073 = vmatpush1.msra.mxu0 0.0
  %2074 = vmatprep.subr.mxu0 0.0
  %2075 = vmatpush1.msra.mxu0 0.0
  %2076 = vmatprep.subr.mxu0 0.0
  %2077 = vmatpush1.msra.mxu0 0.0
  %2078 = vmatprep.subr.mxu0 0.0
  %2079 = vmatpush1.msra.mxu0 0.0
  %2080 = vmatprep.subr.mxu0 0.0
  %2081 = vmatpush1.msra.mxu0 0.0
  %2082 = vmatprep.subr.mxu0 %v1952
  %2083 = vmatpush1.msra.mxu0 %v1949
  %2084 = vmatprep.subr.mxu0 %v1940
  %2085 = vmatpush1.msra.mxu0 %v1939
  %2086 = vmatprep.subr.mxu0 0.0
  %2087 = vmatpush2.msra.mxu0 0.0
  %2088 = vmatprep.subr.mxu0 0.0
  %2089 = vmatpush2.msra.mxu0 0.0
  %2090 = vmatprep.subr.mxu0 0.0
  %2091 = vmatpush2.msra.mxu0 0.0
  %2092 = vmatprep.subr.mxu0 0.0
  %2093 = vmatpush2.msra.mxu0 0.0
  %2094 = vmatprep.subr.mxu0 0.0
  %2095 = vmatpush2.msra.mxu0 0.0
  %2096 = vmatprep.subr.mxu0 0.0
  %2097 = vmatpush2.msra.mxu0 0.0
  %2098 = vmatprep.subr.mxu0 0.0
  %2099 = vmatpush2.msra.mxu0 0.0
  %2100 = vmatprep.subr.mxu0 0.0
  %2101 = vmatpush2.msra.mxu0 0.0
  %2102 = vmatprep.subr.mxu0 0.0
  %2103 = vmatpush2.msra.mxu0 0.0
  %2104 = vmatprep.subr.mxu0 0.0
  %2105 = vmatpush2.msra.mxu0 0.0
  %2106 = vmatprep.subr.mxu0 0.0
  %2107 = vmatpush2.msra.mxu0 0.0
  %2108 = vmatprep.subr.mxu0 0.0
  %2109 = vmatpush2.msra.mxu0 0.0
  %2110 = vmatprep.subr.mxu0 0.0
  %2111 = vmatpush2.msra.mxu0 0.0
  %2112 = vmatprep.subr.mxu0 0.0
  %2113 = vmatpush2.msra.mxu0 0.0
  %2114 = vmatprep.subr.mxu0 0.0
  %2115 = vmatpush2.msra.mxu0 0.0
  %2116 = vmatprep.subr.mxu0 0.0
  %2117 = vmatpush2.msra.mxu0 0.0
  %2118 = vmatprep.mubr.f32.mxu0 0.0
  %2119 = vmatmul.mubr.f32.gmra.mxu0 %v2052
  %v2120 = vpop.f32.mrf.mxu0
  %v2121 = vadd.f32 0.0, %v2120
  %v2122 = vpop.f32.mrf.mxu0
  %v2123 = vadd.f32 0.0, %v2122
  %2124 = vdwg.mxu0
  %s2125 = scalar_lea.vmem %s8, 192
  %v2126 = vld [vmem:[%s2125] sm:$0xff]
  %v2127 = vld [vmem:[%s2125 + $0x8] sm:$0xff]
  %v2128 = vld [vmem:[%s2125 + $0x10] sm:$0xff]
  %v2129 = vld [vmem:[%s2125 + $0x18] sm:$0xff]
  %v2130 = vld [vmem:[%s2125 + $0x20] sm:$0xff]
  %v2131 = vld [vmem:[%s2125 + $0x28] sm:$0xff]
  %v2132 = vld [vmem:[%s2125 + $0x30] sm:$0xff]
  %v2133 = vld [vmem:[%s2125 + $0x38] sm:$0xff]
  %v2134 = vld [vmem:[%s2125 + $0x40] sm:$0xff]
  %v2135 = vld [vmem:[%s2125 + $0x48] sm:$0xff]
  %v2136 = vld [vmem:[%s2125 + $0x50] sm:$0xff]
  %v2137 = vld [vmem:[%s2125 + $0x58] sm:$0xff]
  %v2138 = vld [vmem:[%s2125 + $0x60] sm:$0xff]
  %v2139 = vld [vmem:[%s2125 + $0x68] sm:$0xff]
  %v2140 = vld [vmem:[%s2125 + $0x70] sm:$0xff]
  %v2141 = vld [vmem:[%s2125 + $0x78] sm:$0xff]
  %v2142 = vld [vmem:[%s2125 + $0x80] sm:$0xff]
  %v2143 = vld [vmem:[%s2125 + $0x88] sm:$0xff]
  %v2144 = vld [vmem:[%s2125 + $0x90] sm:$0xff]
  %v2145 = vld [vmem:[%s2125 + $0x98] sm:$0xff]
  %v2146 = vld [vmem:[%s2125 + $0xa0] sm:$0xff]
  %v2147 = vld [vmem:[%s2125 + $0xa8] sm:$0xff]
  %v2148 = vld [vmem:[%s2125 + $0xb0] sm:$0xff]
  %v2149 = vld [vmem:[%s2125 + $0xb8] sm:$0xff]
  %v2151 = vsel %vm47, %v2123, 0
  %2153 = vmatprep.subr.mxu0 0.0
  %2154 = vmatpush1.msra.mxu0 %v2141
  %2155 = vmatprep.subr.mxu0 0.0
  %2156 = vmatpush1.msra.mxu0 %v2140
  %2157 = vmatprep.subr.mxu0 0.0
  %2158 = vmatpush1.msra.mxu0 %v2139
  %2159 = vmatprep.subr.mxu0 0.0
  %2160 = vmatpush1.msra.mxu0 %v2138
  %2161 = vmatprep.subr.mxu0 0.0
  %2162 = vmatpush1.msra.mxu0 %v2137
  %2163 = vmatprep.subr.mxu0 0.0
  %2164 = vmatpush1.msra.mxu0 %v2136
  %2165 = vmatprep.subr.mxu0 0.0
  %2166 = vmatpush1.msra.mxu0 %v2135
  %2167 = vmatprep.subr.mxu0 0.0
  %2168 = vmatpush1.msra.mxu0 %v2134
  %2169 = vmatprep.subr.mxu0 0.0
  %2170 = vmatpush1.msra.mxu0 %v2133
  %2171 = vmatprep.subr.mxu0 0.0
  %2172 = vmatpush1.msra.mxu0 %v2132
  %2173 = vmatprep.subr.mxu0 0.0
  %2174 = vmatpush1.msra.mxu0 %v2131
  %2175 = vmatprep.subr.mxu0 0.0
  %2176 = vmatpush1.msra.mxu0 %v2130
  %2177 = vmatprep.subr.mxu0 0.0
  %2178 = vmatpush1.msra.mxu0 %v2129
  %2179 = vmatprep.subr.mxu0 0.0
  %2180 = vmatpush1.msra.mxu0 %v2128
  %2181 = vmatprep.subr.mxu0 0.0
  %2182 = vmatpush1.msra.mxu0 %v2127
  %2183 = vmatprep.subr.mxu0 0.0
  %2184 = vmatpush1.msra.mxu0 %v2126
  %2185 = vmatprep.subr.mxu0 0.0
  %2186 = vmatpush2.msra.mxu0 0.0
  %2187 = vmatprep.subr.mxu0 0.0
  %2188 = vmatpush2.msra.mxu0 0.0
  %2189 = vmatprep.subr.mxu0 0.0
  %2190 = vmatpush2.msra.mxu0 0.0
  %2191 = vmatprep.subr.mxu0 0.0
  %2192 = vmatpush2.msra.mxu0 0.0
  %2193 = vmatprep.subr.mxu0 0.0
  %2194 = vmatpush2.msra.mxu0 0.0
  %2195 = vmatprep.subr.mxu0 0.0
  %2196 = vmatpush2.msra.mxu0 0.0
  %2197 = vmatprep.subr.mxu0 0.0
  %2198 = vmatpush2.msra.mxu0 0.0
  %2199 = vmatprep.subr.mxu0 0.0
  %2200 = vmatpush2.msra.mxu0 0.0
  %2201 = vmatprep.subr.mxu0 0.0
  %2202 = vmatpush2.msra.mxu0 %v2149
  %2203 = vmatprep.subr.mxu0 0.0
  %2204 = vmatpush2.msra.mxu0 %v2148
  %2205 = vmatprep.subr.mxu0 0.0
  %2206 = vmatpush2.msra.mxu0 %v2147
  %2207 = vmatprep.subr.mxu0 0.0
  %2208 = vmatpush2.msra.mxu0 %v2146
  %2209 = vmatprep.subr.mxu0 0.0
  %2210 = vmatpush2.msra.mxu0 %v2145
  %2211 = vmatprep.subr.mxu0 0.0
  %2212 = vmatpush2.msra.mxu0 %v2144
  %2213 = vmatprep.subr.mxu0 0.0
  %2214 = vmatpush2.msra.mxu0 %v2143
  %2215 = vmatprep.subr.mxu0 0.0
  %2216 = vmatpush2.msra.mxu0 %v2142
  %2217 = vmatprep.mubr.f32.mxu0 %v2151
  %2218 = vmatmul.mubr.f32.gmra.mxu0 %v2121
  %v2219 = vpop.f32.mrf.mxu0
  %v2220 = vadd.f32 0.0, %v2219
  %v2221 = vpop.f32.mrf.mxu0
  %2222 = vdwg.mxu0
  %v2224 = vsel %vm47, %v2023, 0
  %2226 = vmatprep.subr.mxu0 0.0
  %2227 = vmatpush1.msra.mxu0 %v2040
  %2228 = vmatprep.subr.mxu0 0.0
  %2229 = vmatpush1.msra.mxu0 %v2039
  %2230 = vmatprep.subr.mxu0 0.0
  %2231 = vmatpush1.msra.mxu0 %v2038
  %2232 = vmatprep.subr.mxu0 0.0
  %2233 = vmatpush1.msra.mxu0 %v2037
  %2234 = vmatprep.subr.mxu0 0.0
  %2235 = vmatpush1.msra.mxu0 %v2036
  %2236 = vmatprep.subr.mxu0 0.0
  %2237 = vmatpush1.msra.mxu0 %v2035
  %2238 = vmatprep.subr.mxu0 0.0
  %2239 = vmatpush1.msra.mxu0 %v2034
  %2240 = vmatprep.subr.mxu0 0.0
  %2241 = vmatpush1.msra.mxu0 %v2033
  %2242 = vmatprep.subr.mxu0 0.0
  %2243 = vmatpush1.msra.mxu0 %v2032
  %2244 = vmatprep.subr.mxu0 0.0
  %2245 = vmatpush1.msra.mxu0 %v2031
  %2246 = vmatprep.subr.mxu0 0.0
  %2247 = vmatpush1.msra.mxu0 %v2030
  %2248 = vmatprep.subr.mxu0 0.0
  %2249 = vmatpush1.msra.mxu0 %v2029
  %2250 = vmatprep.subr.mxu0 0.0
  %2251 = vmatpush1.msra.mxu0 %v2028
  %2252 = vmatprep.subr.mxu0 0.0
  %2253 = vmatpush1.msra.mxu0 %v2027
  %2254 = vmatprep.subr.mxu0 0.0
  %2255 = vmatpush1.msra.mxu0 %v2026
  %2256 = vmatprep.subr.mxu0 0.0
  %2257 = vmatpush1.msra.mxu0 %v2025
  %2258 = vmatprep.subr.mxu0 0.0
  %2259 = vmatpush2.msra.mxu0 0.0
  %2260 = vmatprep.subr.mxu0 0.0
  %2261 = vmatpush2.msra.mxu0 0.0
  %2262 = vmatprep.subr.mxu0 0.0
  %2263 = vmatpush2.msra.mxu0 0.0
  %2264 = vmatprep.subr.mxu0 0.0
  %2265 = vmatpush2.msra.mxu0 0.0
  %2266 = vmatprep.subr.mxu0 0.0
  %2267 = vmatpush2.msra.mxu0 0.0
  %2268 = vmatprep.subr.mxu0 0.0
  %2269 = vmatpush2.msra.mxu0 0.0
  %2270 = vmatprep.subr.mxu0 0.0
  %2271 = vmatpush2.msra.mxu0 0.0
  %2272 = vmatprep.subr.mxu0 0.0
  %2273 = vmatpush2.msra.mxu0 0.0
  %2274 = vmatprep.subr.mxu0 0.0
  %2275 = vmatpush2.msra.mxu0 %v2048
  %2276 = vmatprep.subr.mxu0 0.0
  %2277 = vmatpush2.msra.mxu0 %v2047
  %2278 = vmatprep.subr.mxu0 0.0
  %2279 = vmatpush2.msra.mxu0 %v2046
  %2280 = vmatprep.subr.mxu0 0.0
  %2281 = vmatpush2.msra.mxu0 %v2045
  %2282 = vmatprep.subr.mxu0 0.0
  %2283 = vmatpush2.msra.mxu0 %v2044
  %2284 = vmatprep.subr.mxu0 0.0
  %2285 = vmatpush2.msra.mxu0 %v2043
  %2286 = vmatprep.subr.mxu0 0.0
  %2287 = vmatpush2.msra.mxu0 %v2042
  %2288 = vmatprep.subr.mxu0 0.0
  %2289 = vmatpush2.msra.mxu0 %v2041
  %2290 = vmatprep.mubr.f32.mxu0 %v2224
  %2291 = vmatmul.mubr.f32.gmra.mxu0 %v2021
  %v2292 = vpop.f32.mrf.mxu0
  %v2293 = vadd.f32 %v2220, %v2292
  %v2294 = vpop.f32.mrf.mxu0
  %2295 = vdwg.mxu0
  %s2296 = scalar_lea.vmem %s7, 16
  %v2297 = vld [vmem:[%s2296] sm:$0xff]
  %v2299 = vsel %vm1944, %v2297, 0
  %2301 = vmatprep.subr.mxu0 0.0
  %2302 = vmatpush1.msra.mxu0 0.0
  %2303 = vmatprep.subr.mxu0 0.0
  %2304 = vmatpush1.msra.mxu0 0.0
  %2305 = vmatprep.subr.mxu0 0.0
  %2306 = vmatpush1.msra.mxu0 0.0
  %2307 = vmatprep.subr.mxu0 0.0
  %2308 = vmatpush1.msra.mxu0 0.0
  %2309 = vmatprep.subr.mxu0 0.0
  %2310 = vmatpush1.msra.mxu0 0.0
  %2311 = vmatprep.subr.mxu0 0.0
  %2312 = vmatpush1.msra.mxu0 0.0
  %2313 = vmatprep.subr.mxu0 0.0
  %2314 = vmatpush1.msra.mxu0 0.0
  %2315 = vmatprep.subr.mxu0 0.0
  %2316 = vmatpush1.msra.mxu0 0.0
  %2317 = vmatprep.subr.mxu0 0.0
  %2318 = vmatpush1.msra.mxu0 0.0
  %2319 = vmatprep.subr.mxu0 0.0
  %2320 = vmatpush1.msra.mxu0 0.0
  %2321 = vmatprep.subr.mxu0 0.0
  %2322 = vmatpush1.msra.mxu0 0.0
  %2323 = vmatprep.subr.mxu0 0.0
  %2324 = vmatpush1.msra.mxu0 0.0
  %2325 = vmatprep.subr.mxu0 0.0
  %2326 = vmatpush1.msra.mxu0 0.0
  %2327 = vmatprep.subr.mxu0 0.0
  %2328 = vmatpush1.msra.mxu0 0.0
  %2329 = vmatprep.subr.mxu0 %v1952
  %2330 = vmatpush1.msra.mxu0 %v1949
  %2331 = vmatprep.subr.mxu0 %v1940
  %2332 = vmatpush1.msra.mxu0 %v1939
  %2333 = vmatprep.subr.mxu0 0.0
  %2334 = vmatpush2.msra.mxu0 0.0
  %2335 = vmatprep.subr.mxu0 0.0
  %2336 = vmatpush2.msra.mxu0 0.0
  %2337 = vmatprep.subr.mxu0 0.0
  %2338 = vmatpush2.msra.mxu0 0.0
  %2339 = vmatprep.subr.mxu0 0.0
  %2340 = vmatpush2.msra.mxu0 0.0
  %2341 = vmatprep.subr.mxu0 0.0
  %2342 = vmatpush2.msra.mxu0 0.0
  %2343 = vmatprep.subr.mxu0 0.0
  %2344 = vmatpush2.msra.mxu0 0.0
  %2345 = vmatprep.subr.mxu0 0.0
  %2346 = vmatpush2.msra.mxu0 0.0
  %2347 = vmatprep.subr.mxu0 0.0
  %2348 = vmatpush2.msra.mxu0 0.0
  %2349 = vmatprep.subr.mxu0 0.0
  %2350 = vmatpush2.msra.mxu0 0.0
  %2351 = vmatprep.subr.mxu0 0.0
  %2352 = vmatpush2.msra.mxu0 0.0
  %2353 = vmatprep.subr.mxu0 0.0
  %2354 = vmatpush2.msra.mxu0 0.0
  %2355 = vmatprep.subr.mxu0 0.0
  %2356 = vmatpush2.msra.mxu0 0.0
  %2357 = vmatprep.subr.mxu0 0.0
  %2358 = vmatpush2.msra.mxu0 0.0
  %2359 = vmatprep.subr.mxu0 0.0
  %2360 = vmatpush2.msra.mxu0 0.0
  %2361 = vmatprep.subr.mxu0 0.0
  %2362 = vmatpush2.msra.mxu0 0.0
  %2363 = vmatprep.subr.mxu0 0.0
  %2364 = vmatpush2.msra.mxu0 0.0
  %2365 = vmatprep.mubr.f32.mxu0 0.0
  %2366 = vmatmul.mubr.f32.gmra.mxu0 %v2299
  %v2367 = vpop.f32.mrf.mxu0
  %v2368 = vadd.f32 0.0, %v2367
  %v2369 = vpop.f32.mrf.mxu0
  %v2370 = vadd.f32 0.0, %v2369
  %2371 = vdwg.mxu0
  %s2372 = scalar_lea.vmem %s8, 384
  %v2373 = vld [vmem:[%s2372] sm:$0xff]
  %v2374 = vld [vmem:[%s2372 + $0x8] sm:$0xff]
  %v2375 = vld [vmem:[%s2372 + $0x10] sm:$0xff]
  %v2376 = vld [vmem:[%s2372 + $0x18] sm:$0xff]
  %v2377 = vld [vmem:[%s2372 + $0x20] sm:$0xff]
  %v2378 = vld [vmem:[%s2372 + $0x28] sm:$0xff]
  %v2379 = vld [vmem:[%s2372 + $0x30] sm:$0xff]
  %v2380 = vld [vmem:[%s2372 + $0x38] sm:$0xff]
  %v2381 = vld [vmem:[%s2372 + $0x40] sm:$0xff]
  %v2382 = vld [vmem:[%s2372 + $0x48] sm:$0xff]
  %v2383 = vld [vmem:[%s2372 + $0x50] sm:$0xff]
  %v2384 = vld [vmem:[%s2372 + $0x58] sm:$0xff]
  %v2385 = vld [vmem:[%s2372 + $0x60] sm:$0xff]
  %v2386 = vld [vmem:[%s2372 + $0x68] sm:$0xff]
  %v2387 = vld [vmem:[%s2372 + $0x70] sm:$0xff]
  %v2388 = vld [vmem:[%s2372 + $0x78] sm:$0xff]
  %v2389 = vld [vmem:[%s2372 + $0x80] sm:$0xff]
  %v2390 = vld [vmem:[%s2372 + $0x88] sm:$0xff]
  %v2391 = vld [vmem:[%s2372 + $0x90] sm:$0xff]
  %v2392 = vld [vmem:[%s2372 + $0x98] sm:$0xff]
  %v2393 = vld [vmem:[%s2372 + $0xa0] sm:$0xff]
  %v2394 = vld [vmem:[%s2372 + $0xa8] sm:$0xff]
  %v2395 = vld [vmem:[%s2372 + $0xb0] sm:$0xff]
  %v2396 = vld [vmem:[%s2372 + $0xb8] sm:$0xff]
  %v2398 = vsel %vm47, %v2370, 0
  %2400 = vmatprep.subr.mxu0 0.0
  %2401 = vmatpush1.msra.mxu0 %v2388
  %2402 = vmatprep.subr.mxu0 0.0
  %2403 = vmatpush1.msra.mxu0 %v2387
  %2404 = vmatprep.subr.mxu0 0.0
  %2405 = vmatpush1.msra.mxu0 %v2386
  %2406 = vmatprep.subr.mxu0 0.0
  %2407 = vmatpush1.msra.mxu0 %v2385
  %2408 = vmatprep.subr.mxu0 0.0
  %2409 = vmatpush1.msra.mxu0 %v2384
  %2410 = vmatprep.subr.mxu0 0.0
  %2411 = vmatpush1.msra.mxu0 %v2383
  %2412 = vmatprep.subr.mxu0 0.0
  %2413 = vmatpush1.msra.mxu0 %v2382
  %2414 = vmatprep.subr.mxu0 0.0
  %2415 = vmatpush1.msra.mxu0 %v2381
  %2416 = vmatprep.subr.mxu0 0.0
  %2417 = vmatpush1.msra.mxu0 %v2380
  %2418 = vmatprep.subr.mxu0 0.0
  %2419 = vmatpush1.msra.mxu0 %v2379
  %2420 = vmatprep.subr.mxu0 0.0
  %2421 = vmatpush1.msra.mxu0 %v2378
  %2422 = vmatprep.subr.mxu0 0.0
  %2423 = vmatpush1.msra.mxu0 %v2377
  %2424 = vmatprep.subr.mxu0 0.0
  %2425 = vmatpush1.msra.mxu0 %v2376
  %2426 = vmatprep.subr.mxu0 0.0
  %2427 = vmatpush1.msra.mxu0 %v2375
  %2428 = vmatprep.subr.mxu0 0.0
  %2429 = vmatpush1.msra.mxu0 %v2374
  %2430 = vmatprep.subr.mxu0 0.0
  %2431 = vmatpush1.msra.mxu0 %v2373
  %2432 = vmatprep.subr.mxu0 0.0
  %2433 = vmatpush2.msra.mxu0 0.0
  %2434 = vmatprep.subr.mxu0 0.0
  %2435 = vmatpush2.msra.mxu0 0.0
  %2436 = vmatprep.subr.mxu0 0.0
  %2437 = vmatpush2.msra.mxu0 0.0
  %2438 = vmatprep.subr.mxu0 0.0
  %2439 = vmatpush2.msra.mxu0 0.0
  %2440 = vmatprep.subr.mxu0 0.0
  %2441 = vmatpush2.msra.mxu0 0.0
  %2442 = vmatprep.subr.mxu0 0.0
  %2443 = vmatpush2.msra.mxu0 0.0
  %2444 = vmatprep.subr.mxu0 0.0
  %2445 = vmatpush2.msra.mxu0 0.0
  %2446 = vmatprep.subr.mxu0 0.0
  %2447 = vmatpush2.msra.mxu0 0.0
  %2448 = vmatprep.subr.mxu0 0.0
  %2449 = vmatpush2.msra.mxu0 %v2396
  %2450 = vmatprep.subr.mxu0 0.0
  %2451 = vmatpush2.msra.mxu0 %v2395
  %2452 = vmatprep.subr.mxu0 0.0
  %2453 = vmatpush2.msra.mxu0 %v2394
  %2454 = vmatprep.subr.mxu0 0.0
  %2455 = vmatpush2.msra.mxu0 %v2393
  %2456 = vmatprep.subr.mxu0 0.0
  %2457 = vmatpush2.msra.mxu0 %v2392
  %2458 = vmatprep.subr.mxu0 0.0
  %2459 = vmatpush2.msra.mxu0 %v2391
  %2460 = vmatprep.subr.mxu0 0.0
  %2461 = vmatpush2.msra.mxu0 %v2390
  %2462 = vmatprep.subr.mxu0 0.0
  %2463 = vmatpush2.msra.mxu0 %v2389
  %2464 = vmatprep.mubr.f32.mxu0 %v2398
  %2465 = vmatmul.mubr.f32.gmra.mxu0 %v2368
  %v2466 = vpop.f32.mrf.mxu0
  %v2467 = vadd.f32 0.0, %v2466
  %v2468 = vpop.f32.mrf.mxu0
  %2469 = vdwg.mxu0
  %v2470 = vadd.f32 %v2293, %v2467
  %v2471 = vld [vmem:[%s9] sm:$0x1]
  %v2473 = vlaneseq
  %v2474 = vshrl.u32 %v2473, 7
  %v2475 = vsub.s32 0, %v2474
  %v2476 = vrot.slane %v2471, %v2475
  %v2478 = vadd.f32 %v2470, %v2476
  %v2479 = vmax.f32 %v2478, 0.0
  %2480 = vst [vmem:[%s10] sm:$0xff] %v2479
  // Predicated region
  $region42: #{random_encoder_minigrid_forward.1} parent=0 // pred_check
    _
  $region43: #{random_encoder_minigrid_forward.1} parent=0 // pred_check_branch
    %2482 = sbr.rel (0) target = $region45
  $region44: #{random_encoder_minigrid_forward.1} parent=0 // pred_region
    _
  $region45: #{random_encoder_minigrid_forward.1} parent=0 // pred_fallthru
    _
  // Predicated region
  $region46: #{random_encoder_minigrid_forward.1} parent=0 // pred_check
    _
  $region47: #{random_encoder_minigrid_forward.1} parent=0 // pred_check_branch
    %2484 = sbr.rel (0) target = $region49
  $region48: #{random_encoder_minigrid_forward.1} parent=0 // pred_region
    _
  $region49: #{random_encoder_minigrid_forward.1} parent=0 // pred_fallthru
    _

</llo_original>
